<compile_context>
chip_gen: v7x
topology: tpu7x:2x2x1
jax: 0.10.0
libtpu: 0.0.40
codegen_flags: <defaults>
</compile_context>

<pallas_src>
import jax
import jax.numpy as jnp
from jax import lax
from jax.experimental import pallas as pl
from jax.experimental.pallas import tpu as pltpu


_ROUNDS = 4                    # vectorized Marsaglia-Tsang rejection rounds
_N_RAND = 2 * _ROUNDS + 1      # uniforms per element: (z, u) per round + 1 boost
_TINY = 1.1754944e-38          # smallest positive normal f32


# ----------------------------- in-kernel helpers -----------------------------

def _bits_to_uniform(bits_u32):
    """uint32 -> U[0,1) float32 via mantissa fill of [1,2)."""
    u_bits = (bits_u32 >> 9) | jnp.uint32(0x3F800000)
    return lax.bitcast_convert_type(u_bits, jnp.float32) - 1.0


def _std_normal(p):
    """N(0,1) from U(0,1) via Acklam's rational inverse-normal-CDF approximation.

    Uses only add/mul/div/log/sqrt, which lower cleanly in Mosaic and in the
    interpret fallback (no reliance on sin/cos or TPU-only primitives).
    """
    a1, a2 = -3.969683028665376e+01, 2.209460984245205e+02
    a3, a4 = -2.759285104469687e+02, 1.383577518672690e+02
    a5, a6 = -3.066479806614716e+01, 2.506628277459239e+00
    b1, b2 = -5.447609879822406e+01, 1.615858368580409e+02
    b3, b4 = -1.556989798598866e+02, 6.680131188771972e+01
    b5 = -1.328068155288572e+01
    c1, c2 = -7.784894002430293e-03, -3.223964580411365e-01
    c3, c4 = -2.400758277161838e+00, -2.549732539343734e+00
    c5, c6 = 4.374664141464968e+00, 2.938163982698783e+00
    d1, d2 = 7.784695709041462e-03, 3.224671290700398e-01
    d3, d4 = 2.445134137142996e+00, 3.754408661907416e+00
    plow = 0.02425

    p = jnp.clip(p, 1e-7, 1.0 - 1e-7)

    # tail branch (computed symmetrically on min(p, 1-p), then sign-flipped)
    p_t = jnp.minimum(p, 1.0 - p)
    q_t = jnp.sqrt(-2.0 * jnp.log(p_t))
    num_t = ((((c1 * q_t + c2) * q_t + c3) * q_t + c4) * q_t + c5) * q_t + c6
    den_t = (((d1 * q_t + d2) * q_t + d3) * q_t + d4) * q_t + 1.0
    x_tail = num_t / den_t                      # negative (lower-tail value)
    x_tail = jnp.where(p < 0.5, x_tail, -x_tail)

    # central branch
    q_c = p - 0.5
    r = q_c * q_c
    num_c = (((((a1 * r + a2) * r + a3) * r + a4) * r + a5) * r + a6) * q_c
    den_c = ((((b1 * r + b2) * r + b3) * r + b4) * r + b5) * r + 1.0
    x_cent = num_c / den_c

    is_tail = (p < plow) | (p > (1.0 - plow))
    return jnp.where(is_tail, x_tail, x_cent)


# --------------------------------- kernel ------------------------------------

def _gamma_rsample_kernel(a_ref, b_ref, bits_ref, out_ref):
    """exp(params) + Gamma(alpha, rate) sampling (Marsaglia-Tsang) for one row tile.

    a_ref, b_ref : (S, 1, F)            parameters (one copy per source row)
    bits_ref     : (2R+1, S, NB, F)     raw uint32 random bits
    out_ref      : (S, NB, F)           samples (nbatch axis explicit)
    """
    f32 = jnp.float32
    a = a_ref[...].astype(f32)                  # (S, 1, F)
    b = b_ref[...].astype(f32)                  # (S, 1, F)

    alpha = jnp.exp(a)                          # concentration
    inv_rate = jnp.exp(-b)                      # 1 / rate   (fold divide into exp)
    inv_alpha = jnp.exp(-a)                     # 1 / alpha  (for the boost exponent)

    needs_boost = a < 0.0                       # alpha < 1  <=>  a < 0 (exp monotone)
    alpha_b = jnp.where(needs_boost, alpha + 1.0, alpha)

    d = alpha_b - (1.0 / 3.0)                   # (S, 1, F)
    c = lax.rsqrt(9.0 * d)

    shape = out_ref.shape                       # (S, NB, F)

    def uniform(k):                             # k is a static Python int
        return _bits_to_uniform(bits_ref[k])

    # Fixed, fully unrolled rejection rounds; residual failure probability per
    # element is < ~1e-5 for alpha_b >= 1, in which case we fall back to d.
    samp = jnp.broadcast_to(d, shape)
    acc = jnp.zeros(shape, dtype=jnp.bool_)
    for i in range(_ROUNDS):
        z = _std_normal(uniform(2 * i))
        u = uniform(2 * i + 1)
        t = 1.0 + c * z
        v = t * t * t
        v_safe = jnp.maximum(v, 1e-30)
        # log(u + eps) slightly perturbs the acceptance test; statistically benign.
        ok = (v > 0.0) & (
            jnp.log(u + 1e-12) < 0.5 * z * z + d - d * v_safe + d * jnp.log(v_safe)
        )
        take = ok & jnp.logical_not(acc)
        samp = jnp.where(take, d * v_safe, samp)
        acc = acc | ok

    # alpha < 1 boost: Gamma(alpha) = Gamma(alpha + 1) * U^(1/alpha)
    u_boost = jnp.maximum(uniform(2 * _ROUNDS), 1e-12)
    boost = jnp.exp(jnp.log(u_boost) * inv_alpha)
    samp = jnp.where(needs_boost, samp * boost, samp)

    # strict positivity even if the boost underflows for very small alpha
    out_ref[...] = jnp.maximum(samp * inv_rate, _TINY).astype(out_ref.dtype)


# -------------------------------- wrapper ------------------------------------

def _pick_src_tile(rows, nbatch, dfeat, vmem_budget_bytes=8 << 20):
    """How many source rows each grid step handles.

    The tile must divide `rows` and (unless it equals `rows`) be a multiple of
    8 so the param blocks satisfy the (8, 128) tiling constraint.  The budget
    is kept well under the default scoped VMEM so the same tile size is safe
    on v7x's smaller (64 MiB) VMEM as well as v5e/v6e.
    """
    # bits + output block + a handful of full-tile f32 temporaries per src row
    bytes_per_src_row = nbatch * dfeat * 4 * (_N_RAND + 12)
    cap = max(1, vmem_budget_bytes // max(1, bytes_per_src_row))
    best = None
    for s in range(8, min(rows, cap) + 1, 8):
        if rows % s == 0:
            best = s
    # Small problems (like the demo) use a single block over all source rows.
    return best if best is not None else rows


def gamma_forward(param_a, param_b, nbatch, key):
    """Equivalent of Gamma.forward(nbatch): rsample of Gamma(exp(a), rate=exp(b))."""
    rows, dfeat = param_a.shape
    n_out = rows * nbatch

    # Host-side randomness: raw bits only; all transforms happen in the kernel.
    bits = jax.random.bits(key, (_N_RAND, rows, nbatch, dfeat), dtype=jnp.uint32)

    # Present params with an explicit singleton nbatch axis (free metadata reshape)
    # so the kernel broadcasts over nbatch without any in-kernel relayout.
    a3 = param_a.reshape(rows, 1, dfeat)
    b3 = param_b.reshape(rows, 1, dfeat)

    s_tile = _pick_src_tile(rows, nbatch, dfeat)
    grid = (rows // s_tile,)

    out3 = pl.pallas_call(
        _gamma_rsample_kernel,
        out_shape=jax.ShapeDtypeStruct((rows, nbatch, dfeat), param_a.dtype),
        grid=grid,
        in_specs=[
            pl.BlockSpec((s_tile, 1, dfeat), lambda i: (i, 0, 0)),
            pl.BlockSpec((s_tile, 1, dfeat), lambda i: (i, 0, 0)),
            pl.BlockSpec((_N_RAND, s_tile, nbatch, dfeat), lambda i: (0, i, 0, 0)),
        ],
        out_specs=pl.BlockSpec((s_tile, nbatch, dfeat), lambda i: (i, 0, 0)),
        compiler_params=pltpu.CompilerParams(
            dimension_semantics=("parallel",),
        ),
    )(a3, b3, bits)

    # (rows, nbatch, feat) -> (rows*nbatch, feat): rows [0,0,..,1,1,..], exactly
    # torch.repeat_interleave(nbatch, dim=0) ordering.
    return out3.reshape(n_out, dfeat)


# ---------------------------------- main -------------------------------------

if __name__ == "__main__":
    key = jax.random.PRNGKey(0)

    # dim_tensor template: 2 rows x 128 features (small, lane-aligned)
    dim_tensor = jnp.zeros((2, 128), dtype=jnp.float32)

    # Deterministic init exactly as the module's __init__: zeros_like(dim_tensor)
    param_a = jnp.zeros_like(dim_tensor)
    param_b = jnp.zeros_like(dim_tensor)

    nbatch = 4
    x_out = gamma_forward(param_a, param_b, nbatch, key)
    x_out = jax.block_until_ready(x_out)

    assert x_out.shape == (dim_tensor.shape[0] * nbatch, dim_tensor.shape[1])
    assert x_out.dtype == jnp.float32
    assert bool(jnp.all(jnp.isfinite(x_out)))
    assert bool(jnp.all(x_out > 0.0))          # Gamma samples are strictly positive
    mean = float(jnp.mean(x_out))              # Gamma(1,1) = Exp(1) -> mean ~ 1
    assert 0.5 < mean < 2.0, f"unexpected sample mean {mean}"

    print("KERNEL_OK")
</pallas_src>

<mosaic_0001>
module attributes {stable_mosaic.version = 11 : i64} {
  func.func @_gamma_rsample_kernel(%arg0: i32, %arg1: memref<2x1x128xf32, #tpu.memory_space<vmem>>, %arg2: memref<2x1x128xf32, #tpu.memory_space<vmem>>, %arg3: memref<9x2x4x128xi32, #tpu.memory_space<vmem>>, %arg4: memref<2x4x128xf32, #tpu.memory_space<vmem>>) attributes {dimension_semantics = [#tpu.dimension_semantics<parallel>], iteration_bounds = array<i64: 1>, scalar_prefetch = 0 : i64, scratch_operands = 0 : i64, tpu.core_type = #tpu.core_type<tc>, window_params = [{transform_indices = @transform_0, window_bounds = array<i64: 2, 1, 128>}, {transform_indices = @transform_1, window_bounds = array<i64: 2, 1, 128>}, {transform_indices = @transform_2, window_bounds = array<i64: 9, 2, 4, 128>}, {transform_indices = @transform_3, window_bounds = array<i64: 2, 4, 128>}]} {
    %c0 = arith.constant 0 : index
    %c0_0 = arith.constant 0 : index
    %c0_1 = arith.constant 0 : index
    %0 = vector.load %arg1[%c0, %c0_0, %c0_1] : memref<2x1x128xf32, #tpu.memory_space<vmem>>, vector<2x1x128xf32>
    %c0_2 = arith.constant 0 : index
    %c0_3 = arith.constant 0 : index
    %c0_4 = arith.constant 0 : index
    %1 = vector.load %arg2[%c0_2, %c0_3, %c0_4] : memref<2x1x128xf32, #tpu.memory_space<vmem>>, vector<2x1x128xf32>
    %2 = math.exp %0 : vector<2x1x128xf32>
    %cst = arith.constant 0.000000e+00 : f32
    %3 = vector.broadcast %cst : f32 to vector<2x1x128xf32>
    %4 = arith.subf %3, %1 : vector<2x1x128xf32>
    %5 = math.exp %4 : vector<2x1x128xf32>
    %cst_5 = arith.constant 0.000000e+00 : f32
    %6 = vector.broadcast %cst_5 : f32 to vector<2x1x128xf32>
    %7 = arith.subf %6, %0 : vector<2x1x128xf32>
    %8 = math.exp %7 : vector<2x1x128xf32>
    %cst_6 = arith.constant 0.000000e+00 : f32
    %9 = vector.broadcast %cst_6 : f32 to vector<2x1x128xf32>
    %10 = arith.cmpf olt, %0, %9 : vector<2x1x128xf32>
    %cst_7 = arith.constant 1.000000e+00 : f32
    %11 = vector.broadcast %cst_7 : f32 to vector<2x1x128xf32>
    %12 = arith.addf %2, %11 : vector<2x1x128xf32>
    %13 = arith.select %10, %12, %2 : vector<2x1x128xi1>, vector<2x1x128xf32>
    %cst_8 = arith.constant 0.333333343 : f32
    %14 = vector.broadcast %cst_8 : f32 to vector<2x1x128xf32>
    %15 = arith.subf %13, %14 : vector<2x1x128xf32>
    %cst_9 = arith.constant 9.000000e+00 : f32
    %16 = vector.broadcast %cst_9 : f32 to vector<2x1x128xf32>
    %17 = arith.mulf %16, %15 : vector<2x1x128xf32>
    %18 = math.rsqrt %17 : vector<2x1x128xf32>
    %19 = vector.shape_cast %15 : vector<2x1x128xf32> to vector<2x1x128xf32>
    %20 = vector.broadcast %19 : vector<2x1x128xf32> to vector<2x4x128xf32>
    %false = arith.constant false
    %21 = vector.broadcast %false : i1 to vector<2x4x128xi1>
    %c0_10 = arith.constant 0 : index
    %c0_11 = arith.constant 0 : index
    %c0_12 = arith.constant 0 : index
    %c0_13 = arith.constant 0 : index
    %22 = vector.load %arg3[%c0_10, %c0_11, %c0_12, %c0_13] : memref<9x2x4x128xi32, #tpu.memory_space<vmem>>, vector<1x2x4x128xi32>
    %23 = vector.shape_cast %22 : vector<1x2x4x128xi32> to vector<2x4x128xi32>
    %c9_i32 = arith.constant 9 : i32
    %24 = vector.broadcast %c9_i32 : i32 to vector<2x4x128xi32>
    %25 = arith.shrui %23, %24 : vector<2x4x128xi32>
    %c1065353216_i32 = arith.constant 1065353216 : i32
    %26 = vector.broadcast %c1065353216_i32 : i32 to vector<2x4x128xi32>
    %27 = arith.ori %25, %26 : vector<2x4x128xi32>
    %28 = tpu.bitcast %27 : vector<2x4x128xi32> -> vector<2x4x128xf32>
    %cst_14 = arith.constant 1.000000e+00 : f32
    %29 = vector.broadcast %cst_14 : f32 to vector<2x4x128xf32>
    %30 = arith.subf %28, %29 : vector<2x4x128xf32>
    %cst_15 = arith.constant 1.000000e-07 : f32
    %cst_16 = arith.constant 0.99999988 : f32
    %31 = vector.broadcast %cst_15 : f32 to vector<2x4x128xf32>
    %32 = arith.maximumf %31, %30 : vector<2x4x128xf32>
    %33 = vector.broadcast %cst_16 : f32 to vector<2x4x128xf32>
    %34 = arith.minimumf %33, %32 : vector<2x4x128xf32>
    %cst_17 = arith.constant 1.000000e+00 : f32
    %35 = vector.broadcast %cst_17 : f32 to vector<2x4x128xf32>
    %36 = arith.subf %35, %34 : vector<2x4x128xf32>
    %37 = arith.minimumf %34, %36 : vector<2x4x128xf32>
    %38 = math.log %37 : vector<2x4x128xf32>
    %cst_18 = arith.constant -2.000000e+00 : f32
    %39 = vector.broadcast %cst_18 : f32 to vector<2x4x128xf32>
    %40 = arith.mulf %39, %38 : vector<2x4x128xf32>
    %41 = math.sqrt %40 : vector<2x4x128xf32>
    %cst_19 = arith.constant -0.0077848942 : f32
    %42 = vector.broadcast %cst_19 : f32 to vector<2x4x128xf32>
    %43 = arith.mulf %42, %41 : vector<2x4x128xf32>
    %cst_20 = arith.constant -0.322396457 : f32
    %44 = vector.broadcast %cst_20 : f32 to vector<2x4x128xf32>
    %45 = arith.addf %43, %44 : vector<2x4x128xf32>
    %46 = arith.mulf %45, %41 : vector<2x4x128xf32>
    %cst_21 = arith.constant -2.40075827 : f32
    %47 = vector.broadcast %cst_21 : f32 to vector<2x4x128xf32>
    %48 = arith.addf %46, %47 : vector<2x4x128xf32>
    %49 = arith.mulf %48, %41 : vector<2x4x128xf32>
    %cst_22 = arith.constant -2.54973245 : f32
    %50 = vector.broadcast %cst_22 : f32 to vector<2x4x128xf32>
    %51 = arith.addf %49, %50 : vector<2x4x128xf32>
    %52 = arith.mulf %51, %41 : vector<2x4x128xf32>
    %cst_23 = arith.constant 4.37466431 : f32
    %53 = vector.broadcast %cst_23 : f32 to vector<2x4x128xf32>
    %54 = arith.addf %52, %53 : vector<2x4x128xf32>
    %55 = arith.mulf %54, %41 : vector<2x4x128xf32>
    %cst_24 = arith.constant 2.938164 : f32
    %56 = vector.broadcast %cst_24 : f32 to vector<2x4x128xf32>
    %57 = arith.addf %55, %56 : vector<2x4x128xf32>
    %cst_25 = arith.constant 0.00778469583 : f32
    %58 = vector.broadcast %cst_25 : f32 to vector<2x4x128xf32>
    %59 = arith.mulf %58, %41 : vector<2x4x128xf32>
    %cst_26 = arith.constant 0.322467119 : f32
    %60 = vector.broadcast %cst_26 : f32 to vector<2x4x128xf32>
    %61 = arith.addf %59, %60 : vector<2x4x128xf32>
    %62 = arith.mulf %61, %41 : vector<2x4x128xf32>
    %cst_27 = arith.constant 2.44513416 : f32
    %63 = vector.broadcast %cst_27 : f32 to vector<2x4x128xf32>
    %64 = arith.addf %62, %63 : vector<2x4x128xf32>
    %65 = arith.mulf %64, %41 : vector<2x4x128xf32>
    %cst_28 = arith.constant 3.7544086 : f32
    %66 = vector.broadcast %cst_28 : f32 to vector<2x4x128xf32>
    %67 = arith.addf %65, %66 : vector<2x4x128xf32>
    %68 = arith.mulf %67, %41 : vector<2x4x128xf32>
    %cst_29 = arith.constant 1.000000e+00 : f32
    %69 = vector.broadcast %cst_29 : f32 to vector<2x4x128xf32>
    %70 = arith.addf %68, %69 : vector<2x4x128xf32>
    %71 = arith.divf %57, %70 : vector<2x4x128xf32>
    %cst_30 = arith.constant 5.000000e-01 : f32
    %72 = vector.broadcast %cst_30 : f32 to vector<2x4x128xf32>
    %73 = arith.cmpf olt, %34, %72 : vector<2x4x128xf32>
    %cst_31 = arith.constant 0.000000e+00 : f32
    %74 = vector.broadcast %cst_31 : f32 to vector<2x4x128xf32>
    %75 = arith.subf %74, %71 : vector<2x4x128xf32>
    %76 = arith.select %73, %71, %75 : vector<2x4x128xi1>, vector<2x4x128xf32>
    %cst_32 = arith.constant 5.000000e-01 : f32
    %77 = vector.broadcast %cst_32 : f32 to vector<2x4x128xf32>
    %78 = arith.subf %34, %77 : vector<2x4x128xf32>
    %79 = arith.mulf %78, %78 : vector<2x4x128xf32>
    %cst_33 = arith.constant -39.6968307 : f32
    %80 = vector.broadcast %cst_33 : f32 to vector<2x4x128xf32>
    %81 = arith.mulf %80, %79 : vector<2x4x128xf32>
    %cst_34 = arith.constant 220.946106 : f32
    %82 = vector.broadcast %cst_34 : f32 to vector<2x4x128xf32>
    %83 = arith.addf %81, %82 : vector<2x4x128xf32>
    %84 = arith.mulf %83, %79 : vector<2x4x128xf32>
    %cst_35 = arith.constant -275.928497 : f32
    %85 = vector.broadcast %cst_35 : f32 to vector<2x4x128xf32>
    %86 = arith.addf %84, %85 : vector<2x4x128xf32>
    %87 = arith.mulf %86, %79 : vector<2x4x128xf32>
    %cst_36 = arith.constant 138.357758 : f32
    %88 = vector.broadcast %cst_36 : f32 to vector<2x4x128xf32>
    %89 = arith.addf %87, %88 : vector<2x4x128xf32>
    %90 = arith.mulf %89, %79 : vector<2x4x128xf32>
    %cst_37 = arith.constant -30.6647987 : f32
    %91 = vector.broadcast %cst_37 : f32 to vector<2x4x128xf32>
    %92 = arith.addf %90, %91 : vector<2x4x128xf32>
    %93 = arith.mulf %92, %79 : vector<2x4x128xf32>
    %cst_38 = arith.constant 2.50662827 : f32
    %94 = vector.broadcast %cst_38 : f32 to vector<2x4x128xf32>
    %95 = arith.addf %93, %94 : vector<2x4x128xf32>
    %96 = arith.mulf %95, %78 : vector<2x4x128xf32>
    %cst_39 = arith.constant -54.4760971 : f32
    %97 = vector.broadcast %cst_39 : f32 to vector<2x4x128xf32>
    %98 = arith.mulf %97, %79 : vector<2x4x128xf32>
    %cst_40 = arith.constant 161.585831 : f32
    %99 = vector.broadcast %cst_40 : f32 to vector<2x4x128xf32>
    %100 = arith.addf %98, %99 : vector<2x4x128xf32>
    %101 = arith.mulf %100, %79 : vector<2x4x128xf32>
    %cst_41 = arith.constant -155.698975 : f32
    %102 = vector.broadcast %cst_41 : f32 to vector<2x4x128xf32>
    %103 = arith.addf %101, %102 : vector<2x4x128xf32>
    %104 = arith.mulf %103, %79 : vector<2x4x128xf32>
    %cst_42 = arith.constant 66.8013153 : f32
    %105 = vector.broadcast %cst_42 : f32 to vector<2x4x128xf32>
    %106 = arith.addf %104, %105 : vector<2x4x128xf32>
    %107 = arith.mulf %106, %79 : vector<2x4x128xf32>
    %cst_43 = arith.constant -13.2806816 : f32
    %108 = vector.broadcast %cst_43 : f32 to vector<2x4x128xf32>
    %109 = arith.addf %107, %108 : vector<2x4x128xf32>
    %110 = arith.mulf %109, %79 : vector<2x4x128xf32>
    %cst_44 = arith.constant 1.000000e+00 : f32
    %111 = vector.broadcast %cst_44 : f32 to vector<2x4x128xf32>
    %112 = arith.addf %110, %111 : vector<2x4x128xf32>
    %113 = arith.divf %96, %112 : vector<2x4x128xf32>
    %cst_45 = arith.constant 2.425000e-02 : f32
    %114 = vector.broadcast %cst_45 : f32 to vector<2x4x128xf32>
    %115 = arith.cmpf olt, %34, %114 : vector<2x4x128xf32>
    %cst_46 = arith.constant 9.757500e-01 : f32
    %116 = vector.broadcast %cst_46 : f32 to vector<2x4x128xf32>
    %117 = arith.cmpf ogt, %34, %116 : vector<2x4x128xf32>
    %118 = arith.ori %115, %117 : vector<2x4x128xi1>
    %119 = arith.select %118, %76, %113 : vector<2x4x128xi1>, vector<2x4x128xf32>
    %c1 = arith.constant 1 : index
    %c0_47 = arith.constant 0 : index
    %c0_48 = arith.constant 0 : index
    %c0_49 = arith.constant 0 : index
    %120 = vector.load %arg3[%c1, %c0_47, %c0_48, %c0_49] : memref<9x2x4x128xi32, #tpu.memory_space<vmem>>, vector<1x2x4x128xi32>
    %121 = vector.shape_cast %120 : vector<1x2x4x128xi32> to vector<2x4x128xi32>
    %c9_i32_50 = arith.constant 9 : i32
    %122 = vector.broadcast %c9_i32_50 : i32 to vector<2x4x128xi32>
    %123 = arith.shrui %121, %122 : vector<2x4x128xi32>
    %c1065353216_i32_51 = arith.constant 1065353216 : i32
    %124 = vector.broadcast %c1065353216_i32_51 : i32 to vector<2x4x128xi32>
    %125 = arith.ori %123, %124 : vector<2x4x128xi32>
    %126 = tpu.bitcast %125 : vector<2x4x128xi32> -> vector<2x4x128xf32>
    %cst_52 = arith.constant 1.000000e+00 : f32
    %127 = vector.broadcast %cst_52 : f32 to vector<2x4x128xf32>
    %128 = arith.subf %126, %127 : vector<2x4x128xf32>
    %129 = vector.broadcast %18 : vector<2x1x128xf32> to vector<2x4x128xf32>
    %130 = arith.mulf %129, %119 : vector<2x4x128xf32>
    %cst_53 = arith.constant 1.000000e+00 : f32
    %131 = vector.broadcast %cst_53 : f32 to vector<2x4x128xf32>
    %132 = arith.addf %131, %130 : vector<2x4x128xf32>
    %133 = arith.mulf %132, %132 : vector<2x4x128xf32>
    %134 = arith.mulf %133, %132 : vector<2x4x128xf32>
    %cst_54 = arith.constant 1.000000e-30 : f32
    %135 = vector.broadcast %cst_54 : f32 to vector<2x4x128xf32>
    %136 = arith.maximumf %134, %135 : vector<2x4x128xf32>
    %cst_55 = arith.constant 0.000000e+00 : f32
    %137 = vector.broadcast %cst_55 : f32 to vector<2x4x128xf32>
    %138 = arith.cmpf ogt, %134, %137 : vector<2x4x128xf32>
    %cst_56 = arith.constant 9.99999996E-13 : f32
    %139 = vector.broadcast %cst_56 : f32 to vector<2x4x128xf32>
    %140 = arith.addf %128, %139 : vector<2x4x128xf32>
    %141 = math.log %140 : vector<2x4x128xf32>
    %cst_57 = arith.constant 5.000000e-01 : f32
    %142 = vector.broadcast %cst_57 : f32 to vector<2x4x128xf32>
    %143 = arith.mulf %142, %119 : vector<2x4x128xf32>
    %144 = arith.mulf %143, %119 : vector<2x4x128xf32>
    %145 = vector.broadcast %15 : vector<2x1x128xf32> to vector<2x4x128xf32>
    %146 = arith.addf %144, %145 : vector<2x4x128xf32>
    %147 = vector.broadcast %15 : vector<2x1x128xf32> to vector<2x4x128xf32>
    %148 = arith.mulf %147, %136 : vector<2x4x128xf32>
    %149 = arith.subf %146, %148 : vector<2x4x128xf32>
    %150 = math.log %136 : vector<2x4x128xf32>
    %151 = vector.broadcast %15 : vector<2x1x128xf32> to vector<2x4x128xf32>
    %152 = arith.mulf %151, %150 : vector<2x4x128xf32>
    %153 = arith.addf %149, %152 : vector<2x4x128xf32>
    %154 = arith.cmpf olt, %141, %153 : vector<2x4x128xf32>
    %155 = arith.andi %138, %154 : vector<2x4x128xi1>
    %cst_58 = arith.constant dense<true> : vector<2x4x128xi1>
    %156 = arith.xori %21, %cst_58 : vector<2x4x128xi1>
    %157 = arith.andi %155, %156 : vector<2x4x128xi1>
    %158 = vector.broadcast %15 : vector<2x1x128xf32> to vector<2x4x128xf32>
    %159 = arith.mulf %158, %136 : vector<2x4x128xf32>
    %160 = arith.select %157, %159, %20 : vector<2x4x128xi1>, vector<2x4x128xf32>
    %161 = arith.ori %21, %155 : vector<2x4x128xi1>
    %c2 = arith.constant 2 : index
    %c0_59 = arith.constant 0 : index
    %c0_60 = arith.constant 0 : index
    %c0_61 = arith.constant 0 : index
    %162 = vector.load %arg3[%c2, %c0_59, %c0_60, %c0_61] : memref<9x2x4x128xi32, #tpu.memory_space<vmem>>, vector<1x2x4x128xi32>
    %163 = vector.shape_cast %162 : vector<1x2x4x128xi32> to vector<2x4x128xi32>
    %c9_i32_62 = arith.constant 9 : i32
    %164 = vector.broadcast %c9_i32_62 : i32 to vector<2x4x128xi32>
    %165 = arith.shrui %163, %164 : vector<2x4x128xi32>
    %c1065353216_i32_63 = arith.constant 1065353216 : i32
    %166 = vector.broadcast %c1065353216_i32_63 : i32 to vector<2x4x128xi32>
    %167 = arith.ori %165, %166 : vector<2x4x128xi32>
    %168 = tpu.bitcast %167 : vector<2x4x128xi32> -> vector<2x4x128xf32>
    %cst_64 = arith.constant 1.000000e+00 : f32
    %169 = vector.broadcast %cst_64 : f32 to vector<2x4x128xf32>
    %170 = arith.subf %168, %169 : vector<2x4x128xf32>
    %cst_65 = arith.constant 1.000000e-07 : f32
    %cst_66 = arith.constant 0.99999988 : f32
    %171 = vector.broadcast %cst_65 : f32 to vector<2x4x128xf32>
    %172 = arith.maximumf %171, %170 : vector<2x4x128xf32>
    %173 = vector.broadcast %cst_66 : f32 to vector<2x4x128xf32>
    %174 = arith.minimumf %173, %172 : vector<2x4x128xf32>
    %cst_67 = arith.constant 1.000000e+00 : f32
    %175 = vector.broadcast %cst_67 : f32 to vector<2x4x128xf32>
    %176 = arith.subf %175, %174 : vector<2x4x128xf32>
    %177 = arith.minimumf %174, %176 : vector<2x4x128xf32>
    %178 = math.log %177 : vector<2x4x128xf32>
    %cst_68 = arith.constant -2.000000e+00 : f32
    %179 = vector.broadcast %cst_68 : f32 to vector<2x4x128xf32>
    %180 = arith.mulf %179, %178 : vector<2x4x128xf32>
    %181 = math.sqrt %180 : vector<2x4x128xf32>
    %cst_69 = arith.constant -0.0077848942 : f32
    %182 = vector.broadcast %cst_69 : f32 to vector<2x4x128xf32>
    %183 = arith.mulf %182, %181 : vector<2x4x128xf32>
    %cst_70 = arith.constant -0.322396457 : f32
    %184 = vector.broadcast %cst_70 : f32 to vector<2x4x128xf32>
    %185 = arith.addf %183, %184 : vector<2x4x128xf32>
    %186 = arith.mulf %185, %181 : vector<2x4x128xf32>
    %cst_71 = arith.constant -2.40075827 : f32
    %187 = vector.broadcast %cst_71 : f32 to vector<2x4x128xf32>
    %188 = arith.addf %186, %187 : vector<2x4x128xf32>
    %189 = arith.mulf %188, %181 : vector<2x4x128xf32>
    %cst_72 = arith.constant -2.54973245 : f32
    %190 = vector.broadcast %cst_72 : f32 to vector<2x4x128xf32>
    %191 = arith.addf %189, %190 : vector<2x4x128xf32>
    %192 = arith.mulf %191, %181 : vector<2x4x128xf32>
    %cst_73 = arith.constant 4.37466431 : f32
    %193 = vector.broadcast %cst_73 : f32 to vector<2x4x128xf32>
    %194 = arith.addf %192, %193 : vector<2x4x128xf32>
    %195 = arith.mulf %194, %181 : vector<2x4x128xf32>
    %cst_74 = arith.constant 2.938164 : f32
    %196 = vector.broadcast %cst_74 : f32 to vector<2x4x128xf32>
    %197 = arith.addf %195, %196 : vector<2x4x128xf32>
    %cst_75 = arith.constant 0.00778469583 : f32
    %198 = vector.broadcast %cst_75 : f32 to vector<2x4x128xf32>
    %199 = arith.mulf %198, %181 : vector<2x4x128xf32>
    %cst_76 = arith.constant 0.322467119 : f32
    %200 = vector.broadcast %cst_76 : f32 to vector<2x4x128xf32>
    %201 = arith.addf %199, %200 : vector<2x4x128xf32>
    %202 = arith.mulf %201, %181 : vector<2x4x128xf32>
    %cst_77 = arith.constant 2.44513416 : f32
    %203 = vector.broadcast %cst_77 : f32 to vector<2x4x128xf32>
    %204 = arith.addf %202, %203 : vector<2x4x128xf32>
    %205 = arith.mulf %204, %181 : vector<2x4x128xf32>
    %cst_78 = arith.constant 3.7544086 : f32
    %206 = vector.broadcast %cst_78 : f32 to vector<2x4x128xf32>
    %207 = arith.addf %205, %206 : vector<2x4x128xf32>
    %208 = arith.mulf %207, %181 : vector<2x4x128xf32>
    %cst_79 = arith.constant 1.000000e+00 : f32
    %209 = vector.broadcast %cst_79 : f32 to vector<2x4x128xf32>
    %210 = arith.addf %208, %209 : vector<2x4x128xf32>
    %211 = arith.divf %197, %210 : vector<2x4x128xf32>
    %cst_80 = arith.constant 5.000000e-01 : f32
    %212 = vector.broadcast %cst_80 : f32 to vector<2x4x128xf32>
    %213 = arith.cmpf olt, %174, %212 : vector<2x4x128xf32>
    %cst_81 = arith.constant 0.000000e+00 : f32
    %214 = vector.broadcast %cst_81 : f32 to vector<2x4x128xf32>
    %215 = arith.subf %214, %211 : vector<2x4x128xf32>
    %216 = arith.select %213, %211, %215 : vector<2x4x128xi1>, vector<2x4x128xf32>
    %cst_82 = arith.constant 5.000000e-01 : f32
    %217 = vector.broadcast %cst_82 : f32 to vector<2x4x128xf32>
    %218 = arith.subf %174, %217 : vector<2x4x128xf32>
    %219 = arith.mulf %218, %218 : vector<2x4x128xf32>
    %cst_83 = arith.constant -39.6968307 : f32
    %220 = vector.broadcast %cst_83 : f32 to vector<2x4x128xf32>
    %221 = arith.mulf %220, %219 : vector<2x4x128xf32>
    %cst_84 = arith.constant 220.946106 : f32
    %222 = vector.broadcast %cst_84 : f32 to vector<2x4x128xf32>
    %223 = arith.addf %221, %222 : vector<2x4x128xf32>
    %224 = arith.mulf %223, %219 : vector<2x4x128xf32>
    %cst_85 = arith.constant -275.928497 : f32
    %225 = vector.broadcast %cst_85 : f32 to vector<2x4x128xf32>
    %226 = arith.addf %224, %225 : vector<2x4x128xf32>
    %227 = arith.mulf %226, %219 : vector<2x4x128xf32>
    %cst_86 = arith.constant 138.357758 : f32
    %228 = vector.broadcast %cst_86 : f32 to vector<2x4x128xf32>
    %229 = arith.addf %227, %228 : vector<2x4x128xf32>
    %230 = arith.mulf %229, %219 : vector<2x4x128xf32>
    %cst_87 = arith.constant -30.6647987 : f32
    %231 = vector.broadcast %cst_87 : f32 to vector<2x4x128xf32>
    %232 = arith.addf %230, %231 : vector<2x4x128xf32>
    %233 = arith.mulf %232, %219 : vector<2x4x128xf32>
    %cst_88 = arith.constant 2.50662827 : f32
    %234 = vector.broadcast %cst_88 : f32 to vector<2x4x128xf32>
    %235 = arith.addf %233, %234 : vector<2x4x128xf32>
    %236 = arith.mulf %235, %218 : vector<2x4x128xf32>
    %cst_89 = arith.constant -54.4760971 : f32
    %237 = vector.broadcast %cst_89 : f32 to vector<2x4x128xf32>
    %238 = arith.mulf %237, %219 : vector<2x4x128xf32>
    %cst_90 = arith.constant 161.585831 : f32
    %239 = vector.broadcast %cst_90 : f32 to vector<2x4x128xf32>
    %240 = arith.addf %238, %239 : vector<2x4x128xf32>
    %241 = arith.mulf %240, %219 : vector<2x4x128xf32>
    %cst_91 = arith.constant -155.698975 : f32
    %242 = vector.broadcast %cst_91 : f32 to vector<2x4x128xf32>
    %243 = arith.addf %241, %242 : vector<2x4x128xf32>
    %244 = arith.mulf %243, %219 : vector<2x4x128xf32>
    %cst_92 = arith.constant 66.8013153 : f32
    %245 = vector.broadcast %cst_92 : f32 to vector<2x4x128xf32>
    %246 = arith.addf %244, %245 : vector<2x4x128xf32>
    %247 = arith.mulf %246, %219 : vector<2x4x128xf32>
    %cst_93 = arith.constant -13.2806816 : f32
    %248 = vector.broadcast %cst_93 : f32 to vector<2x4x128xf32>
    %249 = arith.addf %247, %248 : vector<2x4x128xf32>
    %250 = arith.mulf %249, %219 : vector<2x4x128xf32>
    %cst_94 = arith.constant 1.000000e+00 : f32
    %251 = vector.broadcast %cst_94 : f32 to vector<2x4x128xf32>
    %252 = arith.addf %250, %251 : vector<2x4x128xf32>
    %253 = arith.divf %236, %252 : vector<2x4x128xf32>
    %cst_95 = arith.constant 2.425000e-02 : f32
    %254 = vector.broadcast %cst_95 : f32 to vector<2x4x128xf32>
    %255 = arith.cmpf olt, %174, %254 : vector<2x4x128xf32>
    %cst_96 = arith.constant 9.757500e-01 : f32
    %256 = vector.broadcast %cst_96 : f32 to vector<2x4x128xf32>
    %257 = arith.cmpf ogt, %174, %256 : vector<2x4x128xf32>
    %258 = arith.ori %255, %257 : vector<2x4x128xi1>
    %259 = arith.select %258, %216, %253 : vector<2x4x128xi1>, vector<2x4x128xf32>
    %c3 = arith.constant 3 : index
    %c0_97 = arith.constant 0 : index
    %c0_98 = arith.constant 0 : index
    %c0_99 = arith.constant 0 : index
    %260 = vector.load %arg3[%c3, %c0_97, %c0_98, %c0_99] : memref<9x2x4x128xi32, #tpu.memory_space<vmem>>, vector<1x2x4x128xi32>
    %261 = vector.shape_cast %260 : vector<1x2x4x128xi32> to vector<2x4x128xi32>
    %c9_i32_100 = arith.constant 9 : i32
    %262 = vector.broadcast %c9_i32_100 : i32 to vector<2x4x128xi32>
    %263 = arith.shrui %261, %262 : vector<2x4x128xi32>
    %c1065353216_i32_101 = arith.constant 1065353216 : i32
    %264 = vector.broadcast %c1065353216_i32_101 : i32 to vector<2x4x128xi32>
    %265 = arith.ori %263, %264 : vector<2x4x128xi32>
    %266 = tpu.bitcast %265 : vector<2x4x128xi32> -> vector<2x4x128xf32>
    %cst_102 = arith.constant 1.000000e+00 : f32
    %267 = vector.broadcast %cst_102 : f32 to vector<2x4x128xf32>
    %268 = arith.subf %266, %267 : vector<2x4x128xf32>
    %269 = vector.broadcast %18 : vector<2x1x128xf32> to vector<2x4x128xf32>
    %270 = arith.mulf %269, %259 : vector<2x4x128xf32>
    %cst_103 = arith.constant 1.000000e+00 : f32
    %271 = vector.broadcast %cst_103 : f32 to vector<2x4x128xf32>
    %272 = arith.addf %271, %270 : vector<2x4x128xf32>
    %273 = arith.mulf %272, %272 : vector<2x4x128xf32>
    %274 = arith.mulf %273, %272 : vector<2x4x128xf32>
    %cst_104 = arith.constant 1.000000e-30 : f32
    %275 = vector.broadcast %cst_104 : f32 to vector<2x4x128xf32>
    %276 = arith.maximumf %274, %275 : vector<2x4x128xf32>
    %cst_105 = arith.constant 0.000000e+00 : f32
    %277 = vector.broadcast %cst_105 : f32 to vector<2x4x128xf32>
    %278 = arith.cmpf ogt, %274, %277 : vector<2x4x128xf32>
    %cst_106 = arith.constant 9.99999996E-13 : f32
    %279 = vector.broadcast %cst_106 : f32 to vector<2x4x128xf32>
    %280 = arith.addf %268, %279 : vector<2x4x128xf32>
    %281 = math.log %280 : vector<2x4x128xf32>
    %cst_107 = arith.constant 5.000000e-01 : f32
    %282 = vector.broadcast %cst_107 : f32 to vector<2x4x128xf32>
    %283 = arith.mulf %282, %259 : vector<2x4x128xf32>
    %284 = arith.mulf %283, %259 : vector<2x4x128xf32>
    %285 = vector.broadcast %15 : vector<2x1x128xf32> to vector<2x4x128xf32>
    %286 = arith.addf %284, %285 : vector<2x4x128xf32>
    %287 = vector.broadcast %15 : vector<2x1x128xf32> to vector<2x4x128xf32>
    %288 = arith.mulf %287, %276 : vector<2x4x128xf32>
    %289 = arith.subf %286, %288 : vector<2x4x128xf32>
    %290 = math.log %276 : vector<2x4x128xf32>
    %291 = vector.broadcast %15 : vector<2x1x128xf32> to vector<2x4x128xf32>
    %292 = arith.mulf %291, %290 : vector<2x4x128xf32>
    %293 = arith.addf %289, %292 : vector<2x4x128xf32>
    %294 = arith.cmpf olt, %281, %293 : vector<2x4x128xf32>
    %295 = arith.andi %278, %294 : vector<2x4x128xi1>
    %cst_108 = arith.constant dense<true> : vector<2x4x128xi1>
    %296 = arith.xori %161, %cst_108 : vector<2x4x128xi1>
    %297 = arith.andi %295, %296 : vector<2x4x128xi1>
    %298 = vector.broadcast %15 : vector<2x1x128xf32> to vector<2x4x128xf32>
    %299 = arith.mulf %298, %276 : vector<2x4x128xf32>
    %300 = arith.select %297, %299, %160 : vector<2x4x128xi1>, vector<2x4x128xf32>
    %301 = arith.ori %161, %295 : vector<2x4x128xi1>
    %c4 = arith.constant 4 : index
    %c0_109 = arith.constant 0 : index
    %c0_110 = arith.constant 0 : index
    %c0_111 = arith.constant 0 : index
    %302 = vector.load %arg3[%c4, %c0_109, %c0_110, %c0_111] : memref<9x2x4x128xi32, #tpu.memory_space<vmem>>, vector<1x2x4x128xi32>
    %303 = vector.shape_cast %302 : vector<1x2x4x128xi32> to vector<2x4x128xi32>
    %c9_i32_112 = arith.constant 9 : i32
    %304 = vector.broadcast %c9_i32_112 : i32 to vector<2x4x128xi32>
    %305 = arith.shrui %303, %304 : vector<2x4x128xi32>
    %c1065353216_i32_113 = arith.constant 1065353216 : i32
    %306 = vector.broadcast %c1065353216_i32_113 : i32 to vector<2x4x128xi32>
    %307 = arith.ori %305, %306 : vector<2x4x128xi32>
    %308 = tpu.bitcast %307 : vector<2x4x128xi32> -> vector<2x4x128xf32>
    %cst_114 = arith.constant 1.000000e+00 : f32
    %309 = vector.broadcast %cst_114 : f32 to vector<2x4x128xf32>
    %310 = arith.subf %308, %309 : vector<2x4x128xf32>
    %cst_115 = arith.constant 1.000000e-07 : f32
    %cst_116 = arith.constant 0.99999988 : f32
    %311 = vector.broadcast %cst_115 : f32 to vector<2x4x128xf32>
    %312 = arith.maximumf %311, %310 : vector<2x4x128xf32>
    %313 = vector.broadcast %cst_116 : f32 to vector<2x4x128xf32>
    %314 = arith.minimumf %313, %312 : vector<2x4x128xf32>
    %cst_117 = arith.constant 1.000000e+00 : f32
    %315 = vector.broadcast %cst_117 : f32 to vector<2x4x128xf32>
    %316 = arith.subf %315, %314 : vector<2x4x128xf32>
    %317 = arith.minimumf %314, %316 : vector<2x4x128xf32>
    %318 = math.log %317 : vector<2x4x128xf32>
    %cst_118 = arith.constant -2.000000e+00 : f32
    %319 = vector.broadcast %cst_118 : f32 to vector<2x4x128xf32>
    %320 = arith.mulf %319, %318 : vector<2x4x128xf32>
    %321 = math.sqrt %320 : vector<2x4x128xf32>
    %cst_119 = arith.constant -0.0077848942 : f32
    %322 = vector.broadcast %cst_119 : f32 to vector<2x4x128xf32>
    %323 = arith.mulf %322, %321 : vector<2x4x128xf32>
    %cst_120 = arith.constant -0.322396457 : f32
    %324 = vector.broadcast %cst_120 : f32 to vector<2x4x128xf32>
    %325 = arith.addf %323, %324 : vector<2x4x128xf32>
    %326 = arith.mulf %325, %321 : vector<2x4x128xf32>
    %cst_121 = arith.constant -2.40075827 : f32
    %327 = vector.broadcast %cst_121 : f32 to vector<2x4x128xf32>
    %328 = arith.addf %326, %327 : vector<2x4x128xf32>
    %329 = arith.mulf %328, %321 : vector<2x4x128xf32>
    %cst_122 = arith.constant -2.54973245 : f32
    %330 = vector.broadcast %cst_122 : f32 to vector<2x4x128xf32>
    %331 = arith.addf %329, %330 : vector<2x4x128xf32>
    %332 = arith.mulf %331, %321 : vector<2x4x128xf32>
    %cst_123 = arith.constant 4.37466431 : f32
    %333 = vector.broadcast %cst_123 : f32 to vector<2x4x128xf32>
    %334 = arith.addf %332, %333 : vector<2x4x128xf32>
    %335 = arith.mulf %334, %321 : vector<2x4x128xf32>
    %cst_124 = arith.constant 2.938164 : f32
    %336 = vector.broadcast %cst_124 : f32 to vector<2x4x128xf32>
    %337 = arith.addf %335, %336 : vector<2x4x128xf32>
    %cst_125 = arith.constant 0.00778469583 : f32
    %338 = vector.broadcast %cst_125 : f32 to vector<2x4x128xf32>
    %339 = arith.mulf %338, %321 : vector<2x4x128xf32>
    %cst_126 = arith.constant 0.322467119 : f32
    %340 = vector.broadcast %cst_126 : f32 to vector<2x4x128xf32>
    %341 = arith.addf %339, %340 : vector<2x4x128xf32>
    %342 = arith.mulf %341, %321 : vector<2x4x128xf32>
    %cst_127 = arith.constant 2.44513416 : f32
    %343 = vector.broadcast %cst_127 : f32 to vector<2x4x128xf32>
    %344 = arith.addf %342, %343 : vector<2x4x128xf32>
    %345 = arith.mulf %344, %321 : vector<2x4x128xf32>
    %cst_128 = arith.constant 3.7544086 : f32
    %346 = vector.broadcast %cst_128 : f32 to vector<2x4x128xf32>
    %347 = arith.addf %345, %346 : vector<2x4x128xf32>
    %348 = arith.mulf %347, %321 : vector<2x4x128xf32>
    %cst_129 = arith.constant 1.000000e+00 : f32
    %349 = vector.broadcast %cst_129 : f32 to vector<2x4x128xf32>
    %350 = arith.addf %348, %349 : vector<2x4x128xf32>
    %351 = arith.divf %337, %350 : vector<2x4x128xf32>
    %cst_130 = arith.constant 5.000000e-01 : f32
    %352 = vector.broadcast %cst_130 : f32 to vector<2x4x128xf32>
    %353 = arith.cmpf olt, %314, %352 : vector<2x4x128xf32>
    %cst_131 = arith.constant 0.000000e+00 : f32
    %354 = vector.broadcast %cst_131 : f32 to vector<2x4x128xf32>
    %355 = arith.subf %354, %351 : vector<2x4x128xf32>
    %356 = arith.select %353, %351, %355 : vector<2x4x128xi1>, vector<2x4x128xf32>
    %cst_132 = arith.constant 5.000000e-01 : f32
    %357 = vector.broadcast %cst_132 : f32 to vector<2x4x128xf32>
    %358 = arith.subf %314, %357 : vector<2x4x128xf32>
    %359 = arith.mulf %358, %358 : vector<2x4x128xf32>
    %cst_133 = arith.constant -39.6968307 : f32
    %360 = vector.broadcast %cst_133 : f32 to vector<2x4x128xf32>
    %361 = arith.mulf %360, %359 : vector<2x4x128xf32>
    %cst_134 = arith.constant 220.946106 : f32
    %362 = vector.broadcast %cst_134 : f32 to vector<2x4x128xf32>
    %363 = arith.addf %361, %362 : vector<2x4x128xf32>
    %364 = arith.mulf %363, %359 : vector<2x4x128xf32>
    %cst_135 = arith.constant -275.928497 : f32
    %365 = vector.broadcast %cst_135 : f32 to vector<2x4x128xf32>
    %366 = arith.addf %364, %365 : vector<2x4x128xf32>
    %367 = arith.mulf %366, %359 : vector<2x4x128xf32>
    %cst_136 = arith.constant 138.357758 : f32
    %368 = vector.broadcast %cst_136 : f32 to vector<2x4x128xf32>
    %369 = arith.addf %367, %368 : vector<2x4x128xf32>
    %370 = arith.mulf %369, %359 : vector<2x4x128xf32>
    %cst_137 = arith.constant -30.6647987 : f32
    %371 = vector.broadcast %cst_137 : f32 to vector<2x4x128xf32>
    %372 = arith.addf %370, %371 : vector<2x4x128xf32>
    %373 = arith.mulf %372, %359 : vector<2x4x128xf32>
    %cst_138 = arith.constant 2.50662827 : f32
    %374 = vector.broadcast %cst_138 : f32 to vector<2x4x128xf32>
    %375 = arith.addf %373, %374 : vector<2x4x128xf32>
    %376 = arith.mulf %375, %358 : vector<2x4x128xf32>
    %cst_139 = arith.constant -54.4760971 : f32
    %377 = vector.broadcast %cst_139 : f32 to vector<2x4x128xf32>
    %378 = arith.mulf %377, %359 : vector<2x4x128xf32>
    %cst_140 = arith.constant 161.585831 : f32
    %379 = vector.broadcast %cst_140 : f32 to vector<2x4x128xf32>
    %380 = arith.addf %378, %379 : vector<2x4x128xf32>
    %381 = arith.mulf %380, %359 : vector<2x4x128xf32>
    %cst_141 = arith.constant -155.698975 : f32
    %382 = vector.broadcast %cst_141 : f32 to vector<2x4x128xf32>
    %383 = arith.addf %381, %382 : vector<2x4x128xf32>
    %384 = arith.mulf %383, %359 : vector<2x4x128xf32>
    %cst_142 = arith.constant 66.8013153 : f32
    %385 = vector.broadcast %cst_142 : f32 to vector<2x4x128xf32>
    %386 = arith.addf %384, %385 : vector<2x4x128xf32>
    %387 = arith.mulf %386, %359 : vector<2x4x128xf32>
    %cst_143 = arith.constant -13.2806816 : f32
    %388 = vector.broadcast %cst_143 : f32 to vector<2x4x128xf32>
    %389 = arith.addf %387, %388 : vector<2x4x128xf32>
    %390 = arith.mulf %389, %359 : vector<2x4x128xf32>
    %cst_144 = arith.constant 1.000000e+00 : f32
    %391 = vector.broadcast %cst_144 : f32 to vector<2x4x128xf32>
    %392 = arith.addf %390, %391 : vector<2x4x128xf32>
    %393 = arith.divf %376, %392 : vector<2x4x128xf32>
    %cst_145 = arith.constant 2.425000e-02 : f32
    %394 = vector.broadcast %cst_145 : f32 to vector<2x4x128xf32>
    %395 = arith.cmpf olt, %314, %394 : vector<2x4x128xf32>
    %cst_146 = arith.constant 9.757500e-01 : f32
    %396 = vector.broadcast %cst_146 : f32 to vector<2x4x128xf32>
    %397 = arith.cmpf ogt, %314, %396 : vector<2x4x128xf32>
    %398 = arith.ori %395, %397 : vector<2x4x128xi1>
    %399 = arith.select %398, %356, %393 : vector<2x4x128xi1>, vector<2x4x128xf32>
    %c5 = arith.constant 5 : index
    %c0_147 = arith.constant 0 : index
    %c0_148 = arith.constant 0 : index
    %c0_149 = arith.constant 0 : index
    %400 = vector.load %arg3[%c5, %c0_147, %c0_148, %c0_149] : memref<9x2x4x128xi32, #tpu.memory_space<vmem>>, vector<1x2x4x128xi32>
    %401 = vector.shape_cast %400 : vector<1x2x4x128xi32> to vector<2x4x128xi32>
    %c9_i32_150 = arith.constant 9 : i32
    %402 = vector.broadcast %c9_i32_150 : i32 to vector<2x4x128xi32>
    %403 = arith.shrui %401, %402 : vector<2x4x128xi32>
    %c1065353216_i32_151 = arith.constant 1065353216 : i32
    %404 = vector.broadcast %c1065353216_i32_151 : i32 to vector<2x4x128xi32>
    %405 = arith.ori %403, %404 : vector<2x4x128xi32>
    %406 = tpu.bitcast %405 : vector<2x4x128xi32> -> vector<2x4x128xf32>
    %cst_152 = arith.constant 1.000000e+00 : f32
    %407 = vector.broadcast %cst_152 : f32 to vector<2x4x128xf32>
    %408 = arith.subf %406, %407 : vector<2x4x128xf32>
    %409 = vector.broadcast %18 : vector<2x1x128xf32> to vector<2x4x128xf32>
    %410 = arith.mulf %409, %399 : vector<2x4x128xf32>
    %cst_153 = arith.constant 1.000000e+00 : f32
    %411 = vector.broadcast %cst_153 : f32 to vector<2x4x128xf32>
    %412 = arith.addf %411, %410 : vector<2x4x128xf32>
    %413 = arith.mulf %412, %412 : vector<2x4x128xf32>
    %414 = arith.mulf %413, %412 : vector<2x4x128xf32>
    %cst_154 = arith.constant 1.000000e-30 : f32
    %415 = vector.broadcast %cst_154 : f32 to vector<2x4x128xf32>
    %416 = arith.maximumf %414, %415 : vector<2x4x128xf32>
    %cst_155 = arith.constant 0.000000e+00 : f32
    %417 = vector.broadcast %cst_155 : f32 to vector<2x4x128xf32>
    %418 = arith.cmpf ogt, %414, %417 : vector<2x4x128xf32>
    %cst_156 = arith.constant 9.99999996E-13 : f32
    %419 = vector.broadcast %cst_156 : f32 to vector<2x4x128xf32>
    %420 = arith.addf %408, %419 : vector<2x4x128xf32>
    %421 = math.log %420 : vector<2x4x128xf32>
    %cst_157 = arith.constant 5.000000e-01 : f32
    %422 = vector.broadcast %cst_157 : f32 to vector<2x4x128xf32>
    %423 = arith.mulf %422, %399 : vector<2x4x128xf32>
    %424 = arith.mulf %423, %399 : vector<2x4x128xf32>
    %425 = vector.broadcast %15 : vector<2x1x128xf32> to vector<2x4x128xf32>
    %426 = arith.addf %424, %425 : vector<2x4x128xf32>
    %427 = vector.broadcast %15 : vector<2x1x128xf32> to vector<2x4x128xf32>
    %428 = arith.mulf %427, %416 : vector<2x4x128xf32>
    %429 = arith.subf %426, %428 : vector<2x4x128xf32>
    %430 = math.log %416 : vector<2x4x128xf32>
    %431 = vector.broadcast %15 : vector<2x1x128xf32> to vector<2x4x128xf32>
    %432 = arith.mulf %431, %430 : vector<2x4x128xf32>
    %433 = arith.addf %429, %432 : vector<2x4x128xf32>
    %434 = arith.cmpf olt, %421, %433 : vector<2x4x128xf32>
    %435 = arith.andi %418, %434 : vector<2x4x128xi1>
    %cst_158 = arith.constant dense<true> : vector<2x4x128xi1>
    %436 = arith.xori %301, %cst_158 : vector<2x4x128xi1>
    %437 = arith.andi %435, %436 : vector<2x4x128xi1>
    %438 = vector.broadcast %15 : vector<2x1x128xf32> to vector<2x4x128xf32>
    %439 = arith.mulf %438, %416 : vector<2x4x128xf32>
    %440 = arith.select %437, %439, %300 : vector<2x4x128xi1>, vector<2x4x128xf32>
    %441 = arith.ori %301, %435 : vector<2x4x128xi1>
    %c6 = arith.constant 6 : index
    %c0_159 = arith.constant 0 : index
    %c0_160 = arith.constant 0 : index
    %c0_161 = arith.constant 0 : index
    %442 = vector.load %arg3[%c6, %c0_159, %c0_160, %c0_161] : memref<9x2x4x128xi32, #tpu.memory_space<vmem>>, vector<1x2x4x128xi32>
    %443 = vector.shape_cast %442 : vector<1x2x4x128xi32> to vector<2x4x128xi32>
    %c9_i32_162 = arith.constant 9 : i32
    %444 = vector.broadcast %c9_i32_162 : i32 to vector<2x4x128xi32>
    %445 = arith.shrui %443, %444 : vector<2x4x128xi32>
    %c1065353216_i32_163 = arith.constant 1065353216 : i32
    %446 = vector.broadcast %c1065353216_i32_163 : i32 to vector<2x4x128xi32>
    %447 = arith.ori %445, %446 : vector<2x4x128xi32>
    %448 = tpu.bitcast %447 : vector<2x4x128xi32> -> vector<2x4x128xf32>
    %cst_164 = arith.constant 1.000000e+00 : f32
    %449 = vector.broadcast %cst_164 : f32 to vector<2x4x128xf32>
    %450 = arith.subf %448, %449 : vector<2x4x128xf32>
    %cst_165 = arith.constant 1.000000e-07 : f32
    %cst_166 = arith.constant 0.99999988 : f32
    %451 = vector.broadcast %cst_165 : f32 to vector<2x4x128xf32>
    %452 = arith.maximumf %451, %450 : vector<2x4x128xf32>
    %453 = vector.broadcast %cst_166 : f32 to vector<2x4x128xf32>
    %454 = arith.minimumf %453, %452 : vector<2x4x128xf32>
    %cst_167 = arith.constant 1.000000e+00 : f32
    %455 = vector.broadcast %cst_167 : f32 to vector<2x4x128xf32>
    %456 = arith.subf %455, %454 : vector<2x4x128xf32>
    %457 = arith.minimumf %454, %456 : vector<2x4x128xf32>
    %458 = math.log %457 : vector<2x4x128xf32>
    %cst_168 = arith.constant -2.000000e+00 : f32
    %459 = vector.broadcast %cst_168 : f32 to vector<2x4x128xf32>
    %460 = arith.mulf %459, %458 : vector<2x4x128xf32>
    %461 = math.sqrt %460 : vector<2x4x128xf32>
    %cst_169 = arith.constant -0.0077848942 : f32
    %462 = vector.broadcast %cst_169 : f32 to vector<2x4x128xf32>
    %463 = arith.mulf %462, %461 : vector<2x4x128xf32>
    %cst_170 = arith.constant -0.322396457 : f32
    %464 = vector.broadcast %cst_170 : f32 to vector<2x4x128xf32>
    %465 = arith.addf %463, %464 : vector<2x4x128xf32>
    %466 = arith.mulf %465, %461 : vector<2x4x128xf32>
    %cst_171 = arith.constant -2.40075827 : f32
    %467 = vector.broadcast %cst_171 : f32 to vector<2x4x128xf32>
    %468 = arith.addf %466, %467 : vector<2x4x128xf32>
    %469 = arith.mulf %468, %461 : vector<2x4x128xf32>
    %cst_172 = arith.constant -2.54973245 : f32
    %470 = vector.broadcast %cst_172 : f32 to vector<2x4x128xf32>
    %471 = arith.addf %469, %470 : vector<2x4x128xf32>
    %472 = arith.mulf %471, %461 : vector<2x4x128xf32>
    %cst_173 = arith.constant 4.37466431 : f32
    %473 = vector.broadcast %cst_173 : f32 to vector<2x4x128xf32>
    %474 = arith.addf %472, %473 : vector<2x4x128xf32>
    %475 = arith.mulf %474, %461 : vector<2x4x128xf32>
    %cst_174 = arith.constant 2.938164 : f32
    %476 = vector.broadcast %cst_174 : f32 to vector<2x4x128xf32>
    %477 = arith.addf %475, %476 : vector<2x4x128xf32>
    %cst_175 = arith.constant 0.00778469583 : f32
    %478 = vector.broadcast %cst_175 : f32 to vector<2x4x128xf32>
    %479 = arith.mulf %478, %461 : vector<2x4x128xf32>
    %cst_176 = arith.constant 0.322467119 : f32
    %480 = vector.broadcast %cst_176 : f32 to vector<2x4x128xf32>
    %481 = arith.addf %479, %480 : vector<2x4x128xf32>
    %482 = arith.mulf %481, %461 : vector<2x4x128xf32>
    %cst_177 = arith.constant 2.44513416 : f32
    %483 = vector.broadcast %cst_177 : f32 to vector<2x4x128xf32>
    %484 = arith.addf %482, %483 : vector<2x4x128xf32>
    %485 = arith.mulf %484, %461 : vector<2x4x128xf32>
    %cst_178 = arith.constant 3.7544086 : f32
    %486 = vector.broadcast %cst_178 : f32 to vector<2x4x128xf32>
    %487 = arith.addf %485, %486 : vector<2x4x128xf32>
    %488 = arith.mulf %487, %461 : vector<2x4x128xf32>
    %cst_179 = arith.constant 1.000000e+00 : f32
    %489 = vector.broadcast %cst_179 : f32 to vector<2x4x128xf32>
    %490 = arith.addf %488, %489 : vector<2x4x128xf32>
    %491 = arith.divf %477, %490 : vector<2x4x128xf32>
    %cst_180 = arith.constant 5.000000e-01 : f32
    %492 = vector.broadcast %cst_180 : f32 to vector<2x4x128xf32>
    %493 = arith.cmpf olt, %454, %492 : vector<2x4x128xf32>
    %cst_181 = arith.constant 0.000000e+00 : f32
    %494 = vector.broadcast %cst_181 : f32 to vector<2x4x128xf32>
    %495 = arith.subf %494, %491 : vector<2x4x128xf32>
    %496 = arith.select %493, %491, %495 : vector<2x4x128xi1>, vector<2x4x128xf32>
    %cst_182 = arith.constant 5.000000e-01 : f32
    %497 = vector.broadcast %cst_182 : f32 to vector<2x4x128xf32>
    %498 = arith.subf %454, %497 : vector<2x4x128xf32>
    %499 = arith.mulf %498, %498 : vector<2x4x128xf32>
    %cst_183 = arith.constant -39.6968307 : f32
    %500 = vector.broadcast %cst_183 : f32 to vector<2x4x128xf32>
    %501 = arith.mulf %500, %499 : vector<2x4x128xf32>
    %cst_184 = arith.constant 220.946106 : f32
    %502 = vector.broadcast %cst_184 : f32 to vector<2x4x128xf32>
    %503 = arith.addf %501, %502 : vector<2x4x128xf32>
    %504 = arith.mulf %503, %499 : vector<2x4x128xf32>
    %cst_185 = arith.constant -275.928497 : f32
    %505 = vector.broadcast %cst_185 : f32 to vector<2x4x128xf32>
    %506 = arith.addf %504, %505 : vector<2x4x128xf32>
    %507 = arith.mulf %506, %499 : vector<2x4x128xf32>
    %cst_186 = arith.constant 138.357758 : f32
    %508 = vector.broadcast %cst_186 : f32 to vector<2x4x128xf32>
    %509 = arith.addf %507, %508 : vector<2x4x128xf32>
    %510 = arith.mulf %509, %499 : vector<2x4x128xf32>
    %cst_187 = arith.constant -30.6647987 : f32
    %511 = vector.broadcast %cst_187 : f32 to vector<2x4x128xf32>
    %512 = arith.addf %510, %511 : vector<2x4x128xf32>
    %513 = arith.mulf %512, %499 : vector<2x4x128xf32>
    %cst_188 = arith.constant 2.50662827 : f32
    %514 = vector.broadcast %cst_188 : f32 to vector<2x4x128xf32>
    %515 = arith.addf %513, %514 : vector<2x4x128xf32>
    %516 = arith.mulf %515, %498 : vector<2x4x128xf32>
    %cst_189 = arith.constant -54.4760971 : f32
    %517 = vector.broadcast %cst_189 : f32 to vector<2x4x128xf32>
    %518 = arith.mulf %517, %499 : vector<2x4x128xf32>
    %cst_190 = arith.constant 161.585831 : f32
    %519 = vector.broadcast %cst_190 : f32 to vector<2x4x128xf32>
    %520 = arith.addf %518, %519 : vector<2x4x128xf32>
    %521 = arith.mulf %520, %499 : vector<2x4x128xf32>
    %cst_191 = arith.constant -155.698975 : f32
    %522 = vector.broadcast %cst_191 : f32 to vector<2x4x128xf32>
    %523 = arith.addf %521, %522 : vector<2x4x128xf32>
    %524 = arith.mulf %523, %499 : vector<2x4x128xf32>
    %cst_192 = arith.constant 66.8013153 : f32
    %525 = vector.broadcast %cst_192 : f32 to vector<2x4x128xf32>
    %526 = arith.addf %524, %525 : vector<2x4x128xf32>
    %527 = arith.mulf %526, %499 : vector<2x4x128xf32>
    %cst_193 = arith.constant -13.2806816 : f32
    %528 = vector.broadcast %cst_193 : f32 to vector<2x4x128xf32>
    %529 = arith.addf %527, %528 : vector<2x4x128xf32>
    %530 = arith.mulf %529, %499 : vector<2x4x128xf32>
    %cst_194 = arith.constant 1.000000e+00 : f32
    %531 = vector.broadcast %cst_194 : f32 to vector<2x4x128xf32>
    %532 = arith.addf %530, %531 : vector<2x4x128xf32>
    %533 = arith.divf %516, %532 : vector<2x4x128xf32>
    %cst_195 = arith.constant 2.425000e-02 : f32
    %534 = vector.broadcast %cst_195 : f32 to vector<2x4x128xf32>
    %535 = arith.cmpf olt, %454, %534 : vector<2x4x128xf32>
    %cst_196 = arith.constant 9.757500e-01 : f32
    %536 = vector.broadcast %cst_196 : f32 to vector<2x4x128xf32>
    %537 = arith.cmpf ogt, %454, %536 : vector<2x4x128xf32>
    %538 = arith.ori %535, %537 : vector<2x4x128xi1>
    %539 = arith.select %538, %496, %533 : vector<2x4x128xi1>, vector<2x4x128xf32>
    %c7 = arith.constant 7 : index
    %c0_197 = arith.constant 0 : index
    %c0_198 = arith.constant 0 : index
    %c0_199 = arith.constant 0 : index
    %540 = vector.load %arg3[%c7, %c0_197, %c0_198, %c0_199] : memref<9x2x4x128xi32, #tpu.memory_space<vmem>>, vector<1x2x4x128xi32>
    %541 = vector.shape_cast %540 : vector<1x2x4x128xi32> to vector<2x4x128xi32>
    %c9_i32_200 = arith.constant 9 : i32
    %542 = vector.broadcast %c9_i32_200 : i32 to vector<2x4x128xi32>
    %543 = arith.shrui %541, %542 : vector<2x4x128xi32>
    %c1065353216_i32_201 = arith.constant 1065353216 : i32
    %544 = vector.broadcast %c1065353216_i32_201 : i32 to vector<2x4x128xi32>
    %545 = arith.ori %543, %544 : vector<2x4x128xi32>
    %546 = tpu.bitcast %545 : vector<2x4x128xi32> -> vector<2x4x128xf32>
    %cst_202 = arith.constant 1.000000e+00 : f32
    %547 = vector.broadcast %cst_202 : f32 to vector<2x4x128xf32>
    %548 = arith.subf %546, %547 : vector<2x4x128xf32>
    %549 = vector.broadcast %18 : vector<2x1x128xf32> to vector<2x4x128xf32>
    %550 = arith.mulf %549, %539 : vector<2x4x128xf32>
    %cst_203 = arith.constant 1.000000e+00 : f32
    %551 = vector.broadcast %cst_203 : f32 to vector<2x4x128xf32>
    %552 = arith.addf %551, %550 : vector<2x4x128xf32>
    %553 = arith.mulf %552, %552 : vector<2x4x128xf32>
    %554 = arith.mulf %553, %552 : vector<2x4x128xf32>
    %cst_204 = arith.constant 1.000000e-30 : f32
    %555 = vector.broadcast %cst_204 : f32 to vector<2x4x128xf32>
    %556 = arith.maximumf %554, %555 : vector<2x4x128xf32>
    %cst_205 = arith.constant 0.000000e+00 : f32
    %557 = vector.broadcast %cst_205 : f32 to vector<2x4x128xf32>
    %558 = arith.cmpf ogt, %554, %557 : vector<2x4x128xf32>
    %cst_206 = arith.constant 9.99999996E-13 : f32
    %559 = vector.broadcast %cst_206 : f32 to vector<2x4x128xf32>
    %560 = arith.addf %548, %559 : vector<2x4x128xf32>
    %561 = math.log %560 : vector<2x4x128xf32>
    %cst_207 = arith.constant 5.000000e-01 : f32
    %562 = vector.broadcast %cst_207 : f32 to vector<2x4x128xf32>
    %563 = arith.mulf %562, %539 : vector<2x4x128xf32>
    %564 = arith.mulf %563, %539 : vector<2x4x128xf32>
    %565 = vector.broadcast %15 : vector<2x1x128xf32> to vector<2x4x128xf32>
    %566 = arith.addf %564, %565 : vector<2x4x128xf32>
    %567 = vector.broadcast %15 : vector<2x1x128xf32> to vector<2x4x128xf32>
    %568 = arith.mulf %567, %556 : vector<2x4x128xf32>
    %569 = arith.subf %566, %568 : vector<2x4x128xf32>
    %570 = math.log %556 : vector<2x4x128xf32>
    %571 = vector.broadcast %15 : vector<2x1x128xf32> to vector<2x4x128xf32>
    %572 = arith.mulf %571, %570 : vector<2x4x128xf32>
    %573 = arith.addf %569, %572 : vector<2x4x128xf32>
    %574 = arith.cmpf olt, %561, %573 : vector<2x4x128xf32>
    %575 = arith.andi %558, %574 : vector<2x4x128xi1>
    %cst_208 = arith.constant dense<true> : vector<2x4x128xi1>
    %576 = arith.xori %441, %cst_208 : vector<2x4x128xi1>
    %577 = arith.andi %575, %576 : vector<2x4x128xi1>
    %578 = vector.broadcast %15 : vector<2x1x128xf32> to vector<2x4x128xf32>
    %579 = arith.mulf %578, %556 : vector<2x4x128xf32>
    %580 = arith.select %577, %579, %440 : vector<2x4x128xi1>, vector<2x4x128xf32>
    %c8 = arith.constant 8 : index
    %c0_209 = arith.constant 0 : index
    %c0_210 = arith.constant 0 : index
    %c0_211 = arith.constant 0 : index
    %581 = vector.load %arg3[%c8, %c0_209, %c0_210, %c0_211] : memref<9x2x4x128xi32, #tpu.memory_space<vmem>>, vector<1x2x4x128xi32>
    %582 = vector.shape_cast %581 : vector<1x2x4x128xi32> to vector<2x4x128xi32>
    %c9_i32_212 = arith.constant 9 : i32
    %583 = vector.broadcast %c9_i32_212 : i32 to vector<2x4x128xi32>
    %584 = arith.shrui %582, %583 : vector<2x4x128xi32>
    %c1065353216_i32_213 = arith.constant 1065353216 : i32
    %585 = vector.broadcast %c1065353216_i32_213 : i32 to vector<2x4x128xi32>
    %586 = arith.ori %584, %585 : vector<2x4x128xi32>
    %587 = tpu.bitcast %586 : vector<2x4x128xi32> -> vector<2x4x128xf32>
    %cst_214 = arith.constant 1.000000e+00 : f32
    %588 = vector.broadcast %cst_214 : f32 to vector<2x4x128xf32>
    %589 = arith.subf %587, %588 : vector<2x4x128xf32>
    %cst_215 = arith.constant 9.99999996E-13 : f32
    %590 = vector.broadcast %cst_215 : f32 to vector<2x4x128xf32>
    %591 = arith.maximumf %589, %590 : vector<2x4x128xf32>
    %592 = math.log %591 : vector<2x4x128xf32>
    %593 = vector.broadcast %8 : vector<2x1x128xf32> to vector<2x4x128xf32>
    %594 = arith.mulf %592, %593 : vector<2x4x128xf32>
    %595 = math.exp %594 : vector<2x4x128xf32>
    %596 = arith.mulf %580, %595 : vector<2x4x128xf32>
    %597 = vector.shape_cast %10 : vector<2x1x128xi1> to vector<2x1x128xi1>
    %598 = vector.broadcast %597 : vector<2x1x128xi1> to vector<2x4x128xi1>
    %599 = arith.select %598, %596, %580 : vector<2x4x128xi1>, vector<2x4x128xf32>
    %600 = vector.broadcast %5 : vector<2x1x128xf32> to vector<2x4x128xf32>
    %601 = arith.mulf %599, %600 : vector<2x4x128xf32>
    %cst_216 = arith.constant 1.17549435E-38 : f32
    %602 = vector.broadcast %cst_216 : f32 to vector<2x4x128xf32>
    %603 = arith.maximumf %601, %602 : vector<2x4x128xf32>
    %c0_217 = arith.constant 0 : index
    %c0_218 = arith.constant 0 : index
    %c0_219 = arith.constant 0 : index
    %604 = vector.load %arg4[%c0_217, %c0_218, %c0_219] : memref<2x4x128xf32, #tpu.memory_space<vmem>>, vector<2x4x128xf32>
    tpu.vector_store %arg4[%c0_217, %c0_218, %c0_219], %603 {strides = array<i32>} : memref<2x4x128xf32, #tpu.memory_space<vmem>>, vector<2x4x128xf32>,
    return
  }
  func.func @transform_0(%arg0: i32) -> (i32, i32, i32) {
    %c0_i32 = arith.constant 0 : i32
    %c0_i32_0 = arith.constant 0 : i32
    %c0_i32_1 = arith.constant 0 : i32
    return %arg0, %c0_i32, %c0_i32_0 : i32, i32, i32
  }
  func.func @transform_1(%arg0: i32) -> (i32, i32, i32) {
    %c0_i32 = arith.constant 0 : i32
    %c0_i32_0 = arith.constant 0 : i32
    %c0_i32_1 = arith.constant 0 : i32
    return %arg0, %c0_i32, %c0_i32_0 : i32, i32, i32
  }
  func.func @transform_2(%arg0: i32) -> (i32, i32, i32, i32) {
    %c0_i32 = arith.constant 0 : i32
    %c0_i32_0 = arith.constant 0 : i32
    %c0_i32_1 = arith.constant 0 : i32
    %c0_i32_2 = arith.constant 0 : i32
    return %c0_i32, %arg0, %c0_i32_0, %c0_i32_1 : i32, i32, i32, i32
  }
  func.func @transform_3(%arg0: i32) -> (i32, i32, i32) {
    %c0_i32 = arith.constant 0 : i32
    %c0_i32_0 = arith.constant 0 : i32
    %c0_i32_1 = arith.constant 0 : i32
    return %arg0, %c0_i32, %c0_i32_0 : i32, i32, i32
  }
}

</mosaic_0001>

<llo_original>
// kernel: tpu_custom_call.1
$region0: #{tpu_custom_call.1}
  #allocation0 [shape = 'u32[]', space=smem, size = 0x4, offset = 0x4, fixed_abs, tag = 'smem constant byte address 0x4 - core index']
  #allocation1 [shape = 'u32[144,128]{1,0:T(1,128)}', space=vmem, size = 0x12000, scoped, tag = 'internal scratch']
  %s0 = inlined_call_operand.hbm [shape: f32[2,1,128], index: 0, kind: input, shape index: {}]
  %s1 = inlined_call_operand.vmem [shape: f32[2,1,128], index: 1, kind: input, shape index: {}]
  %s2 = inlined_call_operand.hbm [shape: u32[9,2,4,128], index: 2, kind: input, shape index: {}]
  %s3 = inlined_call_operand.hbm [shape: f32[2,4,128], index: 3, kind: output, shape index: {}]
  %s4 = sld [smem:[#allocation0]]
  $region30: #{tpu_custom_call.1} parent=0
    _
  %s6 = ssub.s32 1, %s4
  %s7 = scalar_select 0, %s6, %s4
  $region1: #{tpu_custom_call.1} parent=0
    #allocation2 [shape = 'u8[1024]{0}', space=vmem, size = 0x400, scoped, tag = 'input window, operand 0, single buffered']
    #allocation3 [shape = 's32[1]{0}', space=sflag, size = 0x4, scoped, tag = 'scoped memory for tpu_custom_call.1']
    #allocation4 [shape = 's32[1]{0}', space=sflag, size = 0x4, scoped, tag = 'scoped memory for tpu_custom_call.1']
    #allocation5 [shape = 'u8[36864]{0}', space=vmem, size = 0x9000, scoped, tag = 'input window, operand 2, single buffered']
    #allocation6 [shape = 's32[1]{0}', space=sflag, size = 0x4, scoped, tag = 'scoped memory for tpu_custom_call.1']
    #allocation7 [shape = 'u8[4096]{0}', space=vmem, size = 0x1000, scoped, tag = 'output window, operand 0, single buffered']
    %8 = vsyncpa [#allocation3], 0
    %9 = vsyncpa [#allocation6], 0
    %10 = vsyncpa [#allocation4], 0
    // Predicated region
    $region2: #{tpu_custom_call.1} parent=1 // pred_check
      _
    $region3: #{tpu_custom_call.1} parent=1 // pred_check_branch
      %12 = sbr.rel (0) target = $region5
    $region4: #{tpu_custom_call.1} parent=1 // pred_region
      %s14 = ssub.s32 32, 32
      %15 = vsyncadd [#allocation3], %s14
      %s16 = sshll.u32 [#allocation2], 4
      %s17 = int_to_ptr.vmem [resolvable:$true] %s16
      %22 = dma.hbm_to_vmem [thread:$0]  %s0, 32, %s17, [#allocation3], 16, 16, 1
    $region5: #{tpu_custom_call.1} parent=1 // pred_fallthru
      _
    // Predicated region
    $region6: #{tpu_custom_call.1} parent=1 // pred_check
      _
    $region7: #{tpu_custom_call.1} parent=1 // pred_check_branch
      %24 = sbr.rel (0) target = $region9
    $region8: #{tpu_custom_call.1} parent=1 // pred_region
      _
    $region9: #{tpu_custom_call.1} parent=1 // pred_fallthru
      _
    // Predicated region
    $region10: #{tpu_custom_call.1} parent=1 // pred_check
      _
    $region11: #{tpu_custom_call.1} parent=1 // pred_check_branch
      %26 = sbr.rel (0) target = $region13
    $region12: #{tpu_custom_call.1} parent=1 // pred_region
      %s28 = ssub.s32 1152, 1152
      %29 = vsyncadd [#allocation6], %s28
      %s30 = sshll.u32 [#allocation5], 4
      %s31 = int_to_ptr.vmem [resolvable:$true] %s30
      %36 = dma.hbm_to_vmem [thread:$0]  %s2, 1152, %s31, [#allocation6], 64, 64, 4
    $region13: #{tpu_custom_call.1} parent=1 // pred_fallthru
      _
    // Predicated region
    $region14: #{tpu_custom_call.1} parent=1 // pred_check
      _
    $region15: #{tpu_custom_call.1} parent=1 // pred_check_branch
      %38 = sbr.rel (0) target = $region17
    $region16: #{tpu_custom_call.1} parent=1 // pred_region
      %39 = dma.done [#allocation3], 32
    $region17: #{tpu_custom_call.1} parent=1 // pred_fallthru
      _
    // Predicated region
    $region18: #{tpu_custom_call.1} parent=1 // pred_check
      _
    $region19: #{tpu_custom_call.1} parent=1 // pred_check_branch
      %41 = sbr.rel (0) target = $region21
    $region20: #{tpu_custom_call.1} parent=1 // pred_region
      %42 = dma.done [#allocation6], 1152
    $region21: #{tpu_custom_call.1} parent=1 // pred_fallthru
      _
    %v43 = vld [vmem:[#allocation2] sm:$0x1]
    %v44 = vld [vmem:[#allocation2 + $0x1] sm:$0x1]
    %v45 = vld [vmem:[%s1] sm:$0x1]
    %v46 = vld [vmem:[%s1 + $0x1] sm:$0x1]
    %v47 = vmul.f32 %v43, 1.442695
    %v48 = vpow.pop %v47
    %v49 = vmul.f32 %v44, 1.442695
    %v50 = vpow.pop %v49
    %v51 = vsub.f32 0.0, %v45
    %v52 = vsub.f32 0.0, %v46
    %v53 = vmul.f32 %v51, 1.442695
    %v54 = vpow.pop %v53
    %v55 = vmul.f32 %v52, 1.442695
    %v56 = vpow.pop %v55
    %v57 = vsub.f32 0.0, %v43
    %v58 = vsub.f32 0.0, %v44
    %v59 = vmul.f32 %v57, 1.442695
    %v60 = vpow.pop %v59
    %v61 = vmul.f32 %v58, 1.442695
    %v62 = vpow.pop %v61
    %vm63 = vcmp.lt.f32.partialorder %v43, 0.0
    %vm64 = vcmp.lt.f32.partialorder %v44, 0.0
    %v65 = vadd.f32 %v48, 1.0
    %v66 = vadd.f32 %v50, 1.0
    %v67 = vsel %vm63, %v65, %v48
    %v68 = vsel %vm64, %v66, %v50
    %v69 = vsub.f32 %v67, 0.33333334
    %v70 = vsub.f32 %v68, 0.33333334
    %v71 = vmul.f32 %v69, 9.0
    %v72 = vmul.f32 %v70, 9.0
    %v73 = vrsqrt.pop %v71
    %v74 = vrsqrt.pop %v72
    %v77 = vlaneseq
    %v78 = vshrl.u32 %v77, 7
    %v79 = vsub.s32 0, %v78
    %v80 = vrot.slane %v69, %v79
    %v81 = vlaneseq
    %v82 = vshrl.u32 %v81, 7
    %v83 = vsub.s32 0, %v82
    %v84 = vrot.slane %v70, %v83
    %v87 = vld [vmem:[#allocation5] sm:$0xf]
    %v88 = vld [vmem:[#allocation5 + $0x4] sm:$0xf]
    %v89 = vshrl.u32 %v87, 9
    %v90 = vshrl.u32 %v88, 9
    %v91 = vor.u32 %v89, 1065353216
    %v92 = vor.u32 %v90, 1065353216
    %v95 = vsub.f32 %v91, 1.0
    %v96 = vsub.f32 %v92, 1.0
    %v97 = vmax.f32 %v95, 1e-07
    %v98 = vmax.f32 %v96, 1e-07
    %v99 = vmin.f32 %v97, 0.9999999
    %v100 = vmin.f32 %v98, 0.9999999
    %v101 = vsub.f32 1.0, %v99
    %v102 = vsub.f32 1.0, %v100
    %v103 = vmin.f32 %v99, %v101
    %v104 = vmin.f32 %v100, %v102
    %v105 = vlog2.pop %v103
    %v106 = vmul.f32 %v105, 0.6931472
    %v107 = vlog2.pop %v104
    %v108 = vmul.f32 %v107, 0.6931472
    %v109 = vmul.f32 %v106, -2.0
    %v110 = vmul.f32 %v108, -2.0
    %v111 = vrsqrt.pop %v109
    %v112 = vmul.f32 %v109, %v111
    %vm113 = vcmp.eq.f32.partialorder %v109, inf
    %v114 = vsel %vm113, %v109, %v112
    %vm115 = vcmp.eq.f32.partialorder %v109, 0.0
    %v116 = vand.u32 %v109, 2147483648
    %v117 = vsel %vm115, %v116, %v114
    %v118 = vrsqrt.pop %v110
    %v119 = vmul.f32 %v110, %v118
    %vm120 = vcmp.eq.f32.partialorder %v110, inf
    %v121 = vsel %vm120, %v110, %v119
    %vm122 = vcmp.eq.f32.partialorder %v110, 0.0
    %v123 = vand.u32 %v110, 2147483648
    %v124 = vsel %vm122, %v123, %v121
    %v125 = vmul.f32 %v117, -0.007784894
    %v126 = vmul.f32 %v124, -0.007784894
    %v127 = vadd.f32 %v125, -0.32239646
    %v128 = vadd.f32 %v126, -0.32239646
    %v129 = vmul.f32 %v127, %v117
    %v130 = vmul.f32 %v128, %v124
    %v131 = vadd.f32 %v129, -2.4007583
    %v132 = vadd.f32 %v130, -2.4007583
    %v133 = vmul.f32 %v131, %v117
    %v134 = vmul.f32 %v132, %v124
    %v135 = vadd.f32 %v133, -2.5497324
    %v136 = vadd.f32 %v134, -2.5497324
    %v137 = vmul.f32 %v135, %v117
    %v138 = vmul.f32 %v136, %v124
    %v139 = vadd.f32 %v137, 4.3746643
    %v140 = vadd.f32 %v138, 4.3746643
    %v141 = vmul.f32 %v139, %v117
    %v142 = vmul.f32 %v140, %v124
    %v143 = vadd.f32 %v141, 2.938164
    %v144 = vadd.f32 %v142, 2.938164
    %v145 = vmul.f32 %v117, 0.007784696
    %v146 = vmul.f32 %v124, 0.007784696
    %v147 = vadd.f32 %v145, 0.32246712
    %v148 = vadd.f32 %v146, 0.32246712
    %v149 = vmul.f32 %v147, %v117
    %v150 = vmul.f32 %v148, %v124
    %v151 = vadd.f32 %v149, 2.4451342
    %v152 = vadd.f32 %v150, 2.4451342
    %v153 = vmul.f32 %v151, %v117
    %v154 = vmul.f32 %v152, %v124
    %v155 = vadd.f32 %v153, 3.7544086
    %v156 = vadd.f32 %v154, 3.7544086
    %v157 = vmul.f32 %v155, %v117
    %v158 = vmul.f32 %v156, %v124
    %v159 = vadd.f32 %v157, 1.0
    %v160 = vadd.f32 %v158, 1.0
    %v161 = vrcp.pop %v159
    %v162 = vmul.f32 %v143, %v161
    %v163 = vrcp.pop %v160
    %v164 = vmul.f32 %v144, %v163
    %vm165 = vcmp.lt.f32.partialorder %v99, 0.5
    %vm166 = vcmp.lt.f32.partialorder %v100, 0.5
    %v167 = vsub.f32 0.0, %v162
    %v168 = vsub.f32 0.0, %v164
    %v169 = vsel %vm165, %v162, %v167
    %v170 = vsel %vm166, %v164, %v168
    %v171 = vsub.f32 %v99, 0.5
    %v172 = vsub.f32 %v100, 0.5
    %v173 = vmul.f32 %v171, %v171
    %v174 = vmul.f32 %v172, %v172
    %v175 = vmul.f32 %v173, -39.69683
    %v176 = vmul.f32 %v174, -39.69683
    %v177 = vadd.f32 %v175, 220.9461
    %v178 = vadd.f32 %v176, 220.9461
    %v179 = vmul.f32 %v177, %v173
    %v180 = vmul.f32 %v178, %v174
    %v181 = vadd.f32 %v179, -275.9285
    %v182 = vadd.f32 %v180, -275.9285
    %v183 = vmul.f32 %v181, %v173
    %v184 = vmul.f32 %v182, %v174
    %v185 = vadd.f32 %v183, 138.35776
    %v186 = vadd.f32 %v184, 138.35776
    %v187 = vmul.f32 %v185, %v173
    %v188 = vmul.f32 %v186, %v174
    %v189 = vadd.f32 %v187, -30.664799
    %v190 = vadd.f32 %v188, -30.664799
    %v191 = vmul.f32 %v189, %v173
    %v192 = vmul.f32 %v190, %v174
    %v193 = vadd.f32 %v191, 2.5066283
    %v194 = vadd.f32 %v192, 2.5066283
    %v195 = vmul.f32 %v193, %v171
    %v196 = vmul.f32 %v194, %v172
    %v197 = vmul.f32 %v173, -54.476097
    %v198 = vmul.f32 %v174, -54.476097
    %v199 = vadd.f32 %v197, 161.58583
    %v200 = vadd.f32 %v198, 161.58583
    %v201 = vmul.f32 %v199, %v173
    %v202 = vmul.f32 %v200, %v174
    %v203 = vadd.f32 %v201, -155.69897
    %v204 = vadd.f32 %v202, -155.69897
    %v205 = vmul.f32 %v203, %v173
    %v206 = vmul.f32 %v204, %v174
    %v207 = vadd.f32 %v205, 66.801315
    %v208 = vadd.f32 %v206, 66.801315
    %v209 = vmul.f32 %v207, %v173
    %v210 = vmul.f32 %v208, %v174
    %v211 = vadd.f32 %v209, -13.280682
    %v212 = vadd.f32 %v210, -13.280682
    %v213 = vmul.f32 %v211, %v173
    %v214 = vmul.f32 %v212, %v174
    %v215 = vadd.f32 %v213, 1.0
    %v216 = vadd.f32 %v214, 1.0
    %v217 = vrcp.pop %v215
    %v218 = vmul.f32 %v195, %v217
    %v219 = vrcp.pop %v216
    %v220 = vmul.f32 %v196, %v219
    %vm221 = vcmp.lt.f32.partialorder %v99, 0.02425
    %vm222 = vcmp.lt.f32.partialorder %v100, 0.02425
    %vm223 = vcmp.gt.f32.partialorder %v99, 0.97575
    %vm224 = vcmp.gt.f32.partialorder %v100, 0.97575
    %vm225 = vmor %vm221, %vm223
    %vm226 = vmor %vm222, %vm224
    %v227 = vsel %vm225, %v169, %v218
    %v228 = vsel %vm226, %v170, %v220
    %s229 = scalar_lea.vmem [#allocation5], 8
    %v230 = vld [vmem:[%s229] sm:$0xf]
    %v231 = vld [vmem:[%s229 + $0x4] sm:$0xf]
    %v232 = vshrl.u32 %v230, 9
    %v233 = vshrl.u32 %v231, 9
    %v234 = vor.u32 %v232, 1065353216
    %v235 = vor.u32 %v233, 1065353216
    %v238 = vsub.f32 %v234, 1.0
    %v239 = vsub.f32 %v235, 1.0
    %v242 = vlaneseq
    %v243 = vshrl.u32 %v242, 7
    %v244 = vsub.s32 0, %v243
    %v245 = vrot.slane %v73, %v244
    %v246 = vlaneseq
    %v247 = vshrl.u32 %v246, 7
    %v248 = vsub.s32 0, %v247
    %v249 = vrot.slane %v74, %v248
    %v252 = vmul.f32 %v245, %v227
    %v253 = vmul.f32 %v249, %v228
    %v254 = vadd.f32 %v252, 1.0
    %v255 = vadd.f32 %v253, 1.0
    %v256 = vmul.f32 %v254, %v254
    %v257 = vmul.f32 %v255, %v255
    %v258 = vmul.f32 %v256, %v254
    %v259 = vmul.f32 %v257, %v255
    %v260 = vmax.f32 %v258, 1e-30
    %v261 = vmax.f32 %v259, 1e-30
    %vm262 = vcmp.gt.f32.partialorder %v258, 0.0
    %vm263 = vcmp.gt.f32.partialorder %v259, 0.0
    %v264 = vadd.f32 %v238, 1e-12
    %v265 = vadd.f32 %v239, 1e-12
    %v266 = vlog2.pop %v264
    %v267 = vmul.f32 %v266, 0.6931472
    %v268 = vlog2.pop %v265
    %v269 = vmul.f32 %v268, 0.6931472
    %v270 = vmul.f32 %v227, 0.5
    %v271 = vmul.f32 %v228, 0.5
    %v272 = vmul.f32 %v270, %v227
    %v273 = vmul.f32 %v271, %v228
    %v274 = vadd.f32 %v272, %v80
    %v275 = vadd.f32 %v273, %v84
    %v276 = vmul.f32 %v80, %v260
    %v277 = vmul.f32 %v84, %v261
    %v278 = vsub.f32 %v274, %v276
    %v279 = vsub.f32 %v275, %v277
    %v280 = vlog2.pop %v260
    %v281 = vmul.f32 %v280, 0.6931472
    %v282 = vlog2.pop %v261
    %v283 = vmul.f32 %v282, 0.6931472
    %v284 = vmul.f32 %v80, %v281
    %v285 = vmul.f32 %v84, %v283
    %v286 = vadd.f32 %v278, %v284
    %v287 = vadd.f32 %v279, %v285
    %vm288 = vcmp.lt.f32.partialorder %v267, %v286
    %vm289 = vcmp.lt.f32.partialorder %v269, %v287
    %vm290 = vmand %vm262, %vm288
    %vm291 = vmand %vm263, %vm289
    %v292 = vsel %vm290, %v276, %v80
    %v293 = vsel %vm291, %v277, %v84
    %s294 = scalar_lea.vmem [#allocation5], 16
    %v295 = vld [vmem:[%s294] sm:$0xf]
    %v296 = vld [vmem:[%s294 + $0x4] sm:$0xf]
    %v297 = vshrl.u32 %v295, 9
    %v298 = vshrl.u32 %v296, 9
    %v299 = vor.u32 %v297, 1065353216
    %v300 = vor.u32 %v298, 1065353216
    %v303 = vsub.f32 %v299, 1.0
    %v304 = vsub.f32 %v300, 1.0
    %v305 = vmax.f32 %v303, 1e-07
    %v306 = vmax.f32 %v304, 1e-07
    %v307 = vmin.f32 %v305, 0.9999999
    %v308 = vmin.f32 %v306, 0.9999999
    %v309 = vsub.f32 1.0, %v307
    %v310 = vsub.f32 1.0, %v308
    %v311 = vmin.f32 %v307, %v309
    %v312 = vmin.f32 %v308, %v310
    %v313 = vlog2.pop %v311
    %v314 = vmul.f32 %v313, 0.6931472
    %v315 = vlog2.pop %v312
    %v316 = vmul.f32 %v315, 0.6931472
    %v317 = vmul.f32 %v314, -2.0
    %v318 = vmul.f32 %v316, -2.0
    %v319 = vrsqrt.pop %v317
    %v320 = vmul.f32 %v317, %v319
    %vm321 = vcmp.eq.f32.partialorder %v317, inf
    %v322 = vsel %vm321, %v317, %v320
    %vm323 = vcmp.eq.f32.partialorder %v317, 0.0
    %v324 = vand.u32 %v317, 2147483648
    %v325 = vsel %vm323, %v324, %v322
    %v326 = vrsqrt.pop %v318
    %v327 = vmul.f32 %v318, %v326
    %vm328 = vcmp.eq.f32.partialorder %v318, inf
    %v329 = vsel %vm328, %v318, %v327
    %vm330 = vcmp.eq.f32.partialorder %v318, 0.0
    %v331 = vand.u32 %v318, 2147483648
    %v332 = vsel %vm330, %v331, %v329
    %v333 = vmul.f32 %v325, -0.007784894
    %v334 = vmul.f32 %v332, -0.007784894
    %v335 = vadd.f32 %v333, -0.32239646
    %v336 = vadd.f32 %v334, -0.32239646
    %v337 = vmul.f32 %v335, %v325
    %v338 = vmul.f32 %v336, %v332
    %v339 = vadd.f32 %v337, -2.4007583
    %v340 = vadd.f32 %v338, -2.4007583
    %v341 = vmul.f32 %v339, %v325
    %v342 = vmul.f32 %v340, %v332
    %v343 = vadd.f32 %v341, -2.5497324
    %v344 = vadd.f32 %v342, -2.5497324
    %v345 = vmul.f32 %v343, %v325
    %v346 = vmul.f32 %v344, %v332
    %v347 = vadd.f32 %v345, 4.3746643
    %v348 = vadd.f32 %v346, 4.3746643
    %v349 = vmul.f32 %v347, %v325
    %v350 = vmul.f32 %v348, %v332
    %v351 = vadd.f32 %v349, 2.938164
    %v352 = vadd.f32 %v350, 2.938164
    %v353 = vmul.f32 %v325, 0.007784696
    %v354 = vmul.f32 %v332, 0.007784696
    %v355 = vadd.f32 %v353, 0.32246712
    %v356 = vadd.f32 %v354, 0.32246712
    %v357 = vmul.f32 %v355, %v325
    %v358 = vmul.f32 %v356, %v332
    %v359 = vadd.f32 %v357, 2.4451342
    %v360 = vadd.f32 %v358, 2.4451342
    %v361 = vmul.f32 %v359, %v325
    %v362 = vmul.f32 %v360, %v332
    %v363 = vadd.f32 %v361, 3.7544086
    %v364 = vadd.f32 %v362, 3.7544086
    %v365 = vmul.f32 %v363, %v325
    %v366 = vmul.f32 %v364, %v332
    %v367 = vadd.f32 %v365, 1.0
    %v368 = vadd.f32 %v366, 1.0
    %v369 = vrcp.pop %v367
    %v370 = vmul.f32 %v351, %v369
    %v371 = vrcp.pop %v368
    %v372 = vmul.f32 %v352, %v371
    %vm373 = vcmp.lt.f32.partialorder %v307, 0.5
    %vm374 = vcmp.lt.f32.partialorder %v308, 0.5
    %v375 = vsub.f32 0.0, %v370
    %v376 = vsub.f32 0.0, %v372
    %v377 = vsel %vm373, %v370, %v375
    %v378 = vsel %vm374, %v372, %v376
    %v379 = vsub.f32 %v307, 0.5
    %v380 = vsub.f32 %v308, 0.5
    %v381 = vmul.f32 %v379, %v379
    %v382 = vmul.f32 %v380, %v380
    %v383 = vmul.f32 %v381, -39.69683
    %v384 = vmul.f32 %v382, -39.69683
    %v385 = vadd.f32 %v383, 220.9461
    %v386 = vadd.f32 %v384, 220.9461
    %v387 = vmul.f32 %v385, %v381
    %v388 = vmul.f32 %v386, %v382
    %v389 = vadd.f32 %v387, -275.9285
    %v390 = vadd.f32 %v388, -275.9285
    %v391 = vmul.f32 %v389, %v381
    %v392 = vmul.f32 %v390, %v382
    %v393 = vadd.f32 %v391, 138.35776
    %v394 = vadd.f32 %v392, 138.35776
    %v395 = vmul.f32 %v393, %v381
    %v396 = vmul.f32 %v394, %v382
    %v397 = vadd.f32 %v395, -30.664799
    %v398 = vadd.f32 %v396, -30.664799
    %v399 = vmul.f32 %v397, %v381
    %v400 = vmul.f32 %v398, %v382
    %v401 = vadd.f32 %v399, 2.5066283
    %v402 = vadd.f32 %v400, 2.5066283
    %v403 = vmul.f32 %v401, %v379
    %v404 = vmul.f32 %v402, %v380
    %v405 = vmul.f32 %v381, -54.476097
    %v406 = vmul.f32 %v382, -54.476097
    %v407 = vadd.f32 %v405, 161.58583
    %v408 = vadd.f32 %v406, 161.58583
    %v409 = vmul.f32 %v407, %v381
    %v410 = vmul.f32 %v408, %v382
    %v411 = vadd.f32 %v409, -155.69897
    %v412 = vadd.f32 %v410, -155.69897
    %v413 = vmul.f32 %v411, %v381
    %v414 = vmul.f32 %v412, %v382
    %v415 = vadd.f32 %v413, 66.801315
    %v416 = vadd.f32 %v414, 66.801315
    %v417 = vmul.f32 %v415, %v381
    %v418 = vmul.f32 %v416, %v382
    %v419 = vadd.f32 %v417, -13.280682
    %v420 = vadd.f32 %v418, -13.280682
    %v421 = vmul.f32 %v419, %v381
    %v422 = vmul.f32 %v420, %v382
    %v423 = vadd.f32 %v421, 1.0
    %v424 = vadd.f32 %v422, 1.0
    %v425 = vrcp.pop %v423
    %v426 = vmul.f32 %v403, %v425
    %v427 = vrcp.pop %v424
    %v428 = vmul.f32 %v404, %v427
    %vm429 = vcmp.lt.f32.partialorder %v307, 0.02425
    %vm430 = vcmp.lt.f32.partialorder %v308, 0.02425
    %vm431 = vcmp.gt.f32.partialorder %v307, 0.97575
    %vm432 = vcmp.gt.f32.partialorder %v308, 0.97575
    %vm433 = vmor %vm429, %vm431
    %vm434 = vmor %vm430, %vm432
    %v435 = vsel %vm433, %v377, %v426
    %v436 = vsel %vm434, %v378, %v428
    %s437 = scalar_lea.vmem [#allocation5], 24
    %v438 = vld [vmem:[%s437] sm:$0xf]
    %v439 = vld [vmem:[%s437 + $0x4] sm:$0xf]
    %v440 = vshrl.u32 %v438, 9
    %v441 = vshrl.u32 %v439, 9
    %v442 = vor.u32 %v440, 1065353216
    %v443 = vor.u32 %v441, 1065353216
    %v446 = vsub.f32 %v442, 1.0
    %v447 = vsub.f32 %v443, 1.0
    %v448 = vmul.f32 %v245, %v435
    %v449 = vmul.f32 %v249, %v436
    %v450 = vadd.f32 %v448, 1.0
    %v451 = vadd.f32 %v449, 1.0
    %v452 = vmul.f32 %v450, %v450
    %v453 = vmul.f32 %v451, %v451
    %v454 = vmul.f32 %v452, %v450
    %v455 = vmul.f32 %v453, %v451
    %v456 = vmax.f32 %v454, 1e-30
    %v457 = vmax.f32 %v455, 1e-30
    %vm458 = vcmp.gt.f32.partialorder %v454, 0.0
    %vm459 = vcmp.gt.f32.partialorder %v455, 0.0
    %v460 = vadd.f32 %v446, 1e-12
    %v461 = vadd.f32 %v447, 1e-12
    %v462 = vlog2.pop %v460
    %v463 = vmul.f32 %v462, 0.6931472
    %v464 = vlog2.pop %v461
    %v465 = vmul.f32 %v464, 0.6931472
    %v466 = vmul.f32 %v435, 0.5
    %v467 = vmul.f32 %v436, 0.5
    %v468 = vmul.f32 %v466, %v435
    %v469 = vmul.f32 %v467, %v436
    %v470 = vadd.f32 %v468, %v80
    %v471 = vadd.f32 %v469, %v84
    %v472 = vmul.f32 %v80, %v456
    %v473 = vmul.f32 %v84, %v457
    %v474 = vsub.f32 %v470, %v472
    %v475 = vsub.f32 %v471, %v473
    %v476 = vlog2.pop %v456
    %v477 = vmul.f32 %v476, 0.6931472
    %v478 = vlog2.pop %v457
    %v479 = vmul.f32 %v478, 0.6931472
    %v480 = vmul.f32 %v80, %v477
    %v481 = vmul.f32 %v84, %v479
    %v482 = vadd.f32 %v474, %v480
    %v483 = vadd.f32 %v475, %v481
    %vm484 = vcmp.lt.f32.partialorder %v463, %v482
    %vm485 = vcmp.lt.f32.partialorder %v465, %v483
    %vm486 = vmand %vm458, %vm484
    %vm487 = vmand %vm459, %vm485
    %vm488 = vmxor %vm290, 1
    %vm489 = vmxor %vm291, 1
    %vm490 = vmand %vm486, %vm488
    %vm491 = vmand %vm487, %vm489
    %v492 = vsel %vm490, %v472, %v292
    %v493 = vsel %vm491, %v473, %v293
    %vm494 = vmor %vm290, %vm486
    %vm495 = vmor %vm291, %vm487
    %s496 = scalar_lea.vmem [#allocation5], 32
    %v497 = vld [vmem:[%s496] sm:$0xf]
    %v498 = vld [vmem:[%s496 + $0x4] sm:$0xf]
    %v499 = vshrl.u32 %v497, 9
    %v500 = vshrl.u32 %v498, 9
    %v501 = vor.u32 %v499, 1065353216
    %v502 = vor.u32 %v500, 1065353216
    %v505 = vsub.f32 %v501, 1.0
    %v506 = vsub.f32 %v502, 1.0
    %v507 = vmax.f32 %v505, 1e-07
    %v508 = vmax.f32 %v506, 1e-07
    %v509 = vmin.f32 %v507, 0.9999999
    %v510 = vmin.f32 %v508, 0.9999999
    %v511 = vsub.f32 1.0, %v509
    %v512 = vsub.f32 1.0, %v510
    %v513 = vmin.f32 %v509, %v511
    %v514 = vmin.f32 %v510, %v512
    %v515 = vlog2.pop %v513
    %v516 = vmul.f32 %v515, 0.6931472
    %v517 = vlog2.pop %v514
    %v518 = vmul.f32 %v517, 0.6931472
    %v519 = vmul.f32 %v516, -2.0
    %v520 = vmul.f32 %v518, -2.0
    %v521 = vrsqrt.pop %v519
    %v522 = vmul.f32 %v519, %v521
    %vm523 = vcmp.eq.f32.partialorder %v519, inf
    %v524 = vsel %vm523, %v519, %v522
    %vm525 = vcmp.eq.f32.partialorder %v519, 0.0
    %v526 = vand.u32 %v519, 2147483648
    %v527 = vsel %vm525, %v526, %v524
    %v528 = vrsqrt.pop %v520
    %v529 = vmul.f32 %v520, %v528
    %vm530 = vcmp.eq.f32.partialorder %v520, inf
    %v531 = vsel %vm530, %v520, %v529
    %vm532 = vcmp.eq.f32.partialorder %v520, 0.0
    %v533 = vand.u32 %v520, 2147483648
    %v534 = vsel %vm532, %v533, %v531
    %v535 = vmul.f32 %v527, -0.007784894
    %v536 = vmul.f32 %v534, -0.007784894
    %v537 = vadd.f32 %v535, -0.32239646
    %v538 = vadd.f32 %v536, -0.32239646
    %v539 = vmul.f32 %v537, %v527
    %v540 = vmul.f32 %v538, %v534
    %v541 = vadd.f32 %v539, -2.4007583
    %v542 = vadd.f32 %v540, -2.4007583
    %v543 = vmul.f32 %v541, %v527
    %v544 = vmul.f32 %v542, %v534
    %v545 = vadd.f32 %v543, -2.5497324
    %v546 = vadd.f32 %v544, -2.5497324
    %v547 = vmul.f32 %v545, %v527
    %v548 = vmul.f32 %v546, %v534
    %v549 = vadd.f32 %v547, 4.3746643
    %v550 = vadd.f32 %v548, 4.3746643
    %v551 = vmul.f32 %v549, %v527
    %v552 = vmul.f32 %v550, %v534
    %v553 = vadd.f32 %v551, 2.938164
    %v554 = vadd.f32 %v552, 2.938164
    %v555 = vmul.f32 %v527, 0.007784696
    %v556 = vmul.f32 %v534, 0.007784696
    %v557 = vadd.f32 %v555, 0.32246712
    %v558 = vadd.f32 %v556, 0.32246712
    %v559 = vmul.f32 %v557, %v527
    %v560 = vmul.f32 %v558, %v534
    %v561 = vadd.f32 %v559, 2.4451342
    %v562 = vadd.f32 %v560, 2.4451342
    %v563 = vmul.f32 %v561, %v527
    %v564 = vmul.f32 %v562, %v534
    %v565 = vadd.f32 %v563, 3.7544086
    %v566 = vadd.f32 %v564, 3.7544086
    %v567 = vmul.f32 %v565, %v527
    %v568 = vmul.f32 %v566, %v534
    %v569 = vadd.f32 %v567, 1.0
    %v570 = vadd.f32 %v568, 1.0
    %v571 = vrcp.pop %v569
    %v572 = vmul.f32 %v553, %v571
    %v573 = vrcp.pop %v570
    %v574 = vmul.f32 %v554, %v573
    %vm575 = vcmp.lt.f32.partialorder %v509, 0.5
    %vm576 = vcmp.lt.f32.partialorder %v510, 0.5
    %v577 = vsub.f32 0.0, %v572
    %v578 = vsub.f32 0.0, %v574
    %v579 = vsel %vm575, %v572, %v577
    %v580 = vsel %vm576, %v574, %v578
    %v581 = vsub.f32 %v509, 0.5
    %v582 = vsub.f32 %v510, 0.5
    %v583 = vmul.f32 %v581, %v581
    %v584 = vmul.f32 %v582, %v582
    %v585 = vmul.f32 %v583, -39.69683
    %v586 = vmul.f32 %v584, -39.69683
    %v587 = vadd.f32 %v585, 220.9461
    %v588 = vadd.f32 %v586, 220.9461
    %v589 = vmul.f32 %v587, %v583
    %v590 = vmul.f32 %v588, %v584
    %v591 = vadd.f32 %v589, -275.9285
    %v592 = vadd.f32 %v590, -275.9285
    %v593 = vmul.f32 %v591, %v583
    %v594 = vmul.f32 %v592, %v584
    %v595 = vadd.f32 %v593, 138.35776
    %v596 = vadd.f32 %v594, 138.35776
    %v597 = vmul.f32 %v595, %v583
    %v598 = vmul.f32 %v596, %v584
    %v599 = vadd.f32 %v597, -30.664799
    %v600 = vadd.f32 %v598, -30.664799
    %v601 = vmul.f32 %v599, %v583
    %v602 = vmul.f32 %v600, %v584
    %v603 = vadd.f32 %v601, 2.5066283
    %v604 = vadd.f32 %v602, 2.5066283
    %v605 = vmul.f32 %v603, %v581
    %v606 = vmul.f32 %v604, %v582
    %v607 = vmul.f32 %v583, -54.476097
    %v608 = vmul.f32 %v584, -54.476097
    %v609 = vadd.f32 %v607, 161.58583
    %v610 = vadd.f32 %v608, 161.58583
    %v611 = vmul.f32 %v609, %v583
    %v612 = vmul.f32 %v610, %v584
    %v613 = vadd.f32 %v611, -155.69897
    %v614 = vadd.f32 %v612, -155.69897
    %v615 = vmul.f32 %v613, %v583
    %v616 = vmul.f32 %v614, %v584
    %v617 = vadd.f32 %v615, 66.801315
    %v618 = vadd.f32 %v616, 66.801315
    %v619 = vmul.f32 %v617, %v583
    %v620 = vmul.f32 %v618, %v584
    %v621 = vadd.f32 %v619, -13.280682
    %v622 = vadd.f32 %v620, -13.280682
    %v623 = vmul.f32 %v621, %v583
    %v624 = vmul.f32 %v622, %v584
    %v625 = vadd.f32 %v623, 1.0
    %v626 = vadd.f32 %v624, 1.0
    %v627 = vrcp.pop %v625
    %v628 = vmul.f32 %v605, %v627
    %v629 = vrcp.pop %v626
    %v630 = vmul.f32 %v606, %v629
    %vm631 = vcmp.lt.f32.partialorder %v509, 0.02425
    %vm632 = vcmp.lt.f32.partialorder %v510, 0.02425
    %vm633 = vcmp.gt.f32.partialorder %v509, 0.97575
    %vm634 = vcmp.gt.f32.partialorder %v510, 0.97575
    %vm635 = vmor %vm631, %vm633
    %vm636 = vmor %vm632, %vm634
    %v637 = vsel %vm635, %v579, %v628
    %v638 = vsel %vm636, %v580, %v630
    %s639 = scalar_lea.vmem [#allocation5], 40
    %v640 = vld [vmem:[%s639] sm:$0xf]
    %v641 = vld [vmem:[%s639 + $0x4] sm:$0xf]
    %v642 = vshrl.u32 %v640, 9
    %v643 = vshrl.u32 %v641, 9
    %v644 = vor.u32 %v642, 1065353216
    %v645 = vor.u32 %v643, 1065353216
    %v648 = vsub.f32 %v644, 1.0
    %v649 = vsub.f32 %v645, 1.0
    %v650 = vmul.f32 %v245, %v637
    %v651 = vmul.f32 %v249, %v638
    %v652 = vadd.f32 %v650, 1.0
    %v653 = vadd.f32 %v651, 1.0
    %v654 = vmul.f32 %v652, %v652
    %v655 = vmul.f32 %v653, %v653
    %v656 = vmul.f32 %v654, %v652
    %v657 = vmul.f32 %v655, %v653
    %v658 = vmax.f32 %v656, 1e-30
    %v659 = vmax.f32 %v657, 1e-30
    %vm660 = vcmp.gt.f32.partialorder %v656, 0.0
    %vm661 = vcmp.gt.f32.partialorder %v657, 0.0
    %v662 = vadd.f32 %v648, 1e-12
    %v663 = vadd.f32 %v649, 1e-12
    %v664 = vlog2.pop %v662
    %v665 = vmul.f32 %v664, 0.6931472
    %v666 = vlog2.pop %v663
    %v667 = vmul.f32 %v666, 0.6931472
    %v668 = vmul.f32 %v637, 0.5
    %v669 = vmul.f32 %v638, 0.5
    %v670 = vmul.f32 %v668, %v637
    %v671 = vmul.f32 %v669, %v638
    %v672 = vadd.f32 %v670, %v80
    %v673 = vadd.f32 %v671, %v84
    %v674 = vmul.f32 %v80, %v658
    %v675 = vmul.f32 %v84, %v659
    %v676 = vsub.f32 %v672, %v674
    %v677 = vsub.f32 %v673, %v675
    %v678 = vlog2.pop %v658
    %v679 = vmul.f32 %v678, 0.6931472
    %v680 = vlog2.pop %v659
    %v681 = vmul.f32 %v680, 0.6931472
    %v682 = vmul.f32 %v80, %v679
    %v683 = vmul.f32 %v84, %v681
    %v684 = vadd.f32 %v676, %v682
    %v685 = vadd.f32 %v677, %v683
    %vm686 = vcmp.lt.f32.partialorder %v665, %v684
    %vm687 = vcmp.lt.f32.partialorder %v667, %v685
    %vm688 = vmand %vm660, %vm686
    %vm689 = vmand %vm661, %vm687
    %vm690 = vmxor %vm494, 1
    %vm691 = vmxor %vm495, 1
    %vm692 = vmand %vm688, %vm690
    %vm693 = vmand %vm689, %vm691
    %v694 = vsel %vm692, %v674, %v492
    %v695 = vsel %vm693, %v675, %v493
    %vm696 = vmor %vm494, %vm688
    %vm697 = vmor %vm495, %vm689
    %s698 = scalar_lea.vmem [#allocation5], 48
    %v699 = vld [vmem:[%s698] sm:$0xf]
    %v700 = vld [vmem:[%s698 + $0x4] sm:$0xf]
    %v701 = vshrl.u32 %v699, 9
    %v702 = vshrl.u32 %v700, 9
    %v703 = vor.u32 %v701, 1065353216
    %v704 = vor.u32 %v702, 1065353216
    %v707 = vsub.f32 %v703, 1.0
    %v708 = vsub.f32 %v704, 1.0
    %v709 = vmax.f32 %v707, 1e-07
    %v710 = vmax.f32 %v708, 1e-07
    %v711 = vmin.f32 %v709, 0.9999999
    %v712 = vmin.f32 %v710, 0.9999999
    %v713 = vsub.f32 1.0, %v711
    %v714 = vsub.f32 1.0, %v712
    %v715 = vmin.f32 %v711, %v713
    %v716 = vmin.f32 %v712, %v714
    %v717 = vlog2.pop %v715
    %v718 = vmul.f32 %v717, 0.6931472
    %v719 = vlog2.pop %v716
    %v720 = vmul.f32 %v719, 0.6931472
    %v721 = vmul.f32 %v718, -2.0
    %v722 = vmul.f32 %v720, -2.0
    %v723 = vrsqrt.pop %v721
    %v724 = vmul.f32 %v721, %v723
    %vm725 = vcmp.eq.f32.partialorder %v721, inf
    %v726 = vsel %vm725, %v721, %v724
    %vm727 = vcmp.eq.f32.partialorder %v721, 0.0
    %v728 = vand.u32 %v721, 2147483648
    %v729 = vsel %vm727, %v728, %v726
    %v730 = vrsqrt.pop %v722
    %v731 = vmul.f32 %v722, %v730
    %vm732 = vcmp.eq.f32.partialorder %v722, inf
    %v733 = vsel %vm732, %v722, %v731
    %vm734 = vcmp.eq.f32.partialorder %v722, 0.0
    %v735 = vand.u32 %v722, 2147483648
    %v736 = vsel %vm734, %v735, %v733
    %v737 = vmul.f32 %v729, -0.007784894
    %v738 = vmul.f32 %v736, -0.007784894
    %v739 = vadd.f32 %v737, -0.32239646
    %v740 = vadd.f32 %v738, -0.32239646
    %v741 = vmul.f32 %v739, %v729
    %v742 = vmul.f32 %v740, %v736
    %v743 = vadd.f32 %v741, -2.4007583
    %v744 = vadd.f32 %v742, -2.4007583
    %v745 = vmul.f32 %v743, %v729
    %v746 = vmul.f32 %v744, %v736
    %v747 = vadd.f32 %v745, -2.5497324
    %v748 = vadd.f32 %v746, -2.5497324
    %v749 = vmul.f32 %v747, %v729
    %v750 = vmul.f32 %v748, %v736
    %v751 = vadd.f32 %v749, 4.3746643
    %v752 = vadd.f32 %v750, 4.3746643
    %v753 = vmul.f32 %v751, %v729
    %v754 = vmul.f32 %v752, %v736
    %v755 = vadd.f32 %v753, 2.938164
    %v756 = vadd.f32 %v754, 2.938164
    %v757 = vmul.f32 %v729, 0.007784696
    %v758 = vmul.f32 %v736, 0.007784696
    %v759 = vadd.f32 %v757, 0.32246712
    %v760 = vadd.f32 %v758, 0.32246712
    %v761 = vmul.f32 %v759, %v729
    %v762 = vmul.f32 %v760, %v736
    %v763 = vadd.f32 %v761, 2.4451342
    %v764 = vadd.f32 %v762, 2.4451342
    %v765 = vmul.f32 %v763, %v729
    %v766 = vmul.f32 %v764, %v736
    %v767 = vadd.f32 %v765, 3.7544086
    %v768 = vadd.f32 %v766, 3.7544086
    %v769 = vmul.f32 %v767, %v729
    %v770 = vmul.f32 %v768, %v736
    %v771 = vadd.f32 %v769, 1.0
    %v772 = vadd.f32 %v770, 1.0
    %v773 = vrcp.pop %v771
    %v774 = vmul.f32 %v755, %v773
    %v775 = vrcp.pop %v772
    %v776 = vmul.f32 %v756, %v775
    %vm777 = vcmp.lt.f32.partialorder %v711, 0.5
    %vm778 = vcmp.lt.f32.partialorder %v712, 0.5
    %v779 = vsub.f32 0.0, %v774
    %v780 = vsub.f32 0.0, %v776
    %v781 = vsel %vm777, %v774, %v779
    %v782 = vsel %vm778, %v776, %v780
    %v783 = vsub.f32 %v711, 0.5
    %v784 = vsub.f32 %v712, 0.5
    %v785 = vmul.f32 %v783, %v783
    %v786 = vmul.f32 %v784, %v784
    %v787 = vmul.f32 %v785, -39.69683
    %v788 = vmul.f32 %v786, -39.69683
    %v789 = vadd.f32 %v787, 220.9461
    %v790 = vadd.f32 %v788, 220.9461
    %v791 = vmul.f32 %v789, %v785
    %v792 = vmul.f32 %v790, %v786
    %v793 = vadd.f32 %v791, -275.9285
    %v794 = vadd.f32 %v792, -275.9285
    %v795 = vmul.f32 %v793, %v785
    %v796 = vmul.f32 %v794, %v786
    %v797 = vadd.f32 %v795, 138.35776
    %v798 = vadd.f32 %v796, 138.35776
    %v799 = vmul.f32 %v797, %v785
    %v800 = vmul.f32 %v798, %v786
    %v801 = vadd.f32 %v799, -30.664799
    %v802 = vadd.f32 %v800, -30.664799
    %v803 = vmul.f32 %v801, %v785
    %v804 = vmul.f32 %v802, %v786
    %v805 = vadd.f32 %v803, 2.5066283
    %v806 = vadd.f32 %v804, 2.5066283
    %v807 = vmul.f32 %v805, %v783
    %v808 = vmul.f32 %v806, %v784
    %v809 = vmul.f32 %v785, -54.476097
    %v810 = vmul.f32 %v786, -54.476097
    %v811 = vadd.f32 %v809, 161.58583
    %v812 = vadd.f32 %v810, 161.58583
    %v813 = vmul.f32 %v811, %v785
    %v814 = vmul.f32 %v812, %v786
    %v815 = vadd.f32 %v813, -155.69897
    %v816 = vadd.f32 %v814, -155.69897
    %v817 = vmul.f32 %v815, %v785
    %v818 = vmul.f32 %v816, %v786
    %v819 = vadd.f32 %v817, 66.801315
    %v820 = vadd.f32 %v818, 66.801315
    %v821 = vmul.f32 %v819, %v785
    %v822 = vmul.f32 %v820, %v786
    %v823 = vadd.f32 %v821, -13.280682
    %v824 = vadd.f32 %v822, -13.280682
    %v825 = vmul.f32 %v823, %v785
    %v826 = vmul.f32 %v824, %v786
    %v827 = vadd.f32 %v825, 1.0
    %v828 = vadd.f32 %v826, 1.0
    %v829 = vrcp.pop %v827
    %v830 = vmul.f32 %v807, %v829
    %v831 = vrcp.pop %v828
    %v832 = vmul.f32 %v808, %v831
    %vm833 = vcmp.lt.f32.partialorder %v711, 0.02425
    %vm834 = vcmp.lt.f32.partialorder %v712, 0.02425
    %vm835 = vcmp.gt.f32.partialorder %v711, 0.97575
    %vm836 = vcmp.gt.f32.partialorder %v712, 0.97575
    %vm837 = vmor %vm833, %vm835
    %vm838 = vmor %vm834, %vm836
    %v839 = vsel %vm837, %v781, %v830
    %v840 = vsel %vm838, %v782, %v832
    %s841 = scalar_lea.vmem [#allocation5], 56
    %v842 = vld [vmem:[%s841] sm:$0xf]
    %v843 = vld [vmem:[%s841 + $0x4] sm:$0xf]
    %v844 = vshrl.u32 %v842, 9
    %v845 = vshrl.u32 %v843, 9
    %v846 = vor.u32 %v844, 1065353216
    %v847 = vor.u32 %v845, 1065353216
    %v850 = vsub.f32 %v846, 1.0
    %v851 = vsub.f32 %v847, 1.0
    %v852 = vmul.f32 %v245, %v839
    %v853 = vmul.f32 %v249, %v840
    %v854 = vadd.f32 %v852, 1.0
    %v855 = vadd.f32 %v853, 1.0
    %v856 = vmul.f32 %v854, %v854
    %v857 = vmul.f32 %v855, %v855
    %v858 = vmul.f32 %v856, %v854
    %v859 = vmul.f32 %v857, %v855
    %v860 = vmax.f32 %v858, 1e-30
    %v861 = vmax.f32 %v859, 1e-30
    %vm862 = vcmp.gt.f32.partialorder %v858, 0.0
    %vm863 = vcmp.gt.f32.partialorder %v859, 0.0
    %v864 = vadd.f32 %v850, 1e-12
    %v865 = vadd.f32 %v851, 1e-12
    %v866 = vlog2.pop %v864
    %v867 = vmul.f32 %v866, 0.6931472
    %v868 = vlog2.pop %v865
    %v869 = vmul.f32 %v868, 0.6931472
    %v870 = vmul.f32 %v839, 0.5
    %v871 = vmul.f32 %v840, 0.5
    %v872 = vmul.f32 %v870, %v839
    %v873 = vmul.f32 %v871, %v840
    %v874 = vadd.f32 %v872, %v80
    %v875 = vadd.f32 %v873, %v84
    %v876 = vmul.f32 %v80, %v860
    %v877 = vmul.f32 %v84, %v861
    %v878 = vsub.f32 %v874, %v876
    %v879 = vsub.f32 %v875, %v877
    %v880 = vlog2.pop %v860
    %v881 = vmul.f32 %v880, 0.6931472
    %v882 = vlog2.pop %v861
    %v883 = vmul.f32 %v882, 0.6931472
    %v884 = vmul.f32 %v80, %v881
    %v885 = vmul.f32 %v84, %v883
    %v886 = vadd.f32 %v878, %v884
    %v887 = vadd.f32 %v879, %v885
    %vm888 = vcmp.lt.f32.partialorder %v867, %v886
    %vm889 = vcmp.lt.f32.partialorder %v869, %v887
    %vm890 = vmand %vm862, %vm888
    %vm891 = vmand %vm863, %vm889
    %vm892 = vmxor %vm696, 1
    %vm893 = vmxor %vm697, 1
    %vm894 = vmand %vm890, %vm892
    %vm895 = vmand %vm891, %vm893
    %v896 = vsel %vm894, %v876, %v694
    %v897 = vsel %vm895, %v877, %v695
    %s898 = scalar_lea.vmem [#allocation5], 64
    %v899 = vld [vmem:[%s898] sm:$0xf]
    %v900 = vld [vmem:[%s898 + $0x4] sm:$0xf]
    %v901 = vshrl.u32 %v899, 9
    %v902 = vshrl.u32 %v900, 9
    %v903 = vor.u32 %v901, 1065353216
    %v904 = vor.u32 %v902, 1065353216
    %v907 = vsub.f32 %v903, 1.0
    %v908 = vsub.f32 %v904, 1.0
    %v909 = vmax.f32 %v907, 1e-12
    %v910 = vmax.f32 %v908, 1e-12
    %v911 = vlog2.pop %v909
    %v912 = vmul.f32 %v911, 0.6931472
    %v913 = vlog2.pop %v910
    %v914 = vmul.f32 %v913, 0.6931472
    %v917 = vlaneseq
    %v918 = vshrl.u32 %v917, 7
    %v919 = vsub.s32 0, %v918
    %v920 = vrot.slane %v60, %v919
    %v921 = vlaneseq
    %v922 = vshrl.u32 %v921, 7
    %v923 = vsub.s32 0, %v922
    %v924 = vrot.slane %v62, %v923
    %v927 = vmul.f32 %v912, %v920
    %v928 = vmul.f32 %v914, %v924
    %v929 = vmul.f32 %v927, 1.442695
    %v930 = vpow.pop %v929
    %v931 = vmul.f32 %v928, 1.442695
    %v932 = vpow.pop %v931
    %v933 = vmul.f32 %v896, %v930
    %v934 = vmul.f32 %v897, %v932
    %v935 = vsel %vm63, 1, 0
    %v936 = vsel %vm64, 1, 0
    %v937 = vlaneseq
    %v938 = vshrl.u32 %v937, 7
    %v939 = vsub.s32 0, %v938
    %v940 = vrot.slane %v935, %v939
    %v941 = vlaneseq
    %v942 = vshrl.u32 %v941, 7
    %v943 = vsub.s32 0, %v942
    %v944 = vrot.slane %v936, %v943
    %vm945 = vcmp.eq.s32.totalorder %v940, 1
    %vm946 = vcmp.eq.s32.totalorder %v944, 1
    %v947 = vsel %vm945, %v933, %v896
    %v948 = vsel %vm946, %v934, %v897
    %v951 = vlaneseq
    %v952 = vshrl.u32 %v951, 7
    %v953 = vsub.s32 0, %v952
    %v954 = vrot.slane %v54, %v953
    %v955 = vlaneseq
    %v956 = vshrl.u32 %v955, 7
    %v957 = vsub.s32 0, %v956
    %v958 = vrot.slane %v56, %v957
    %v961 = vmul.f32 %v947, %v954
    %v962 = vmul.f32 %v948, %v958
    %v963 = vmax.f32 %v961, 1.1754944e-38
    %v964 = vmax.f32 %v962, 1.1754944e-38
    %965 = vst [vmem:[#allocation7] sm:$0xf] %v963
    %966 = vst [vmem:[#allocation7 + $0x4] sm:$0xf] %v964
    // Predicated region
    $region22: #{tpu_custom_call.1} parent=1 // pred_check
      _
    $region23: #{tpu_custom_call.1} parent=1 // pred_check_branch
      %968 = sbr.rel (0) target = $region25
    $region24: #{tpu_custom_call.1} parent=1 // pred_region
      %s970 = ssub.s32 128, 128
      %971 = vsyncadd [#allocation4], %s970
      %s972 = sshll.u32 [#allocation7], 4
      %s973 = int_to_ptr.vmem [resolvable:$true] %s972
      %978 = dma.vmem_to_hbm [thread:$0]  %s973, 128, %s3, [#allocation4], 64, 64, 4
    $region25: #{tpu_custom_call.1} parent=1 // pred_fallthru
      _
    // Predicated region
    $region26: #{tpu_custom_call.1} parent=1 // pred_check
      _
    $region27: #{tpu_custom_call.1} parent=1 // pred_check_branch
      %980 = sbr.rel (0) target = $region29
    $region28: #{tpu_custom_call.1} parent=1 // pred_region
      %981 = dma.done [#allocation4], 128
    $region29: #{tpu_custom_call.1} parent=1 // pred_fallthru
      _
    %982 = vsyncpa [#allocation3], 1
    %983 = vsyncpa [#allocation6], 1
    %984 = vsyncpa [#allocation4], 1

</llo_original>
